<compile_context>
chip_gen: v6e
topology: v6e:2x2x1
jax: 0.10.0
libtpu: 0.0.40
codegen_flags: <defaults>
</compile_context>

<pallas_src>
import functools

import jax
import jax.numpy as jnp
from jax import lax
from jax.experimental import pallas as pl
from jax.experimental.pallas import tpu as pltpu


# ------------------------------ fused kernel --------------------------------

def _down_kernel(H, W,
                 x_ref, w1_ref, s1_ref, b1_ref, w2_ref, s2_ref, b2_ref,
                 o_ref):
    # x_ref : (1, Cin, H*W)      f32   NCHW input, H/W flattened
    # w1_ref: (9*Cin, Cmid)      bf16  im2col weight, K order = (ky, kx, cin)
    # s1_ref, b1_ref: (1, Cmid)  f32   folded BatchNorm scale / bias
    # w2_ref: (Cout, 9*Cmid)     bf16  row-major over (cout), K order (ky,kx,c)
    # s2_ref, b2_ref: (Cout, 1)  f32
    # o_ref : (1, Cout, Ho*Wo)   f32   NCHW output, H/W flattened
    Ho, Wo = H // 2, W // 2
    Cin = x_ref.shape[1]
    Cmid = w1_ref.shape[1]

    # --- NCHW -> (H*W, Cin): one small in-VMEM transpose (no HBM pass). -----
    xc = x_ref[0]                                          # (Cin, H*W)
    pad_c = (-Cin) % 8                                     # align sublane dim
    if pad_c:
        xc = jnp.concatenate(
            [xc, jnp.zeros((pad_c, H * W), xc.dtype)], axis=0)
    x = xc.T[:, :Cin]                                      # (H*W, Cin)

    # --- MaxPool2d(2): W pairs then H pairs (adjacent rows after flatten). --
    x = jnp.max(x.reshape(H * Wo, 2, Cin), axis=1)         # pool along W
    x = jnp.max(x.reshape(Ho, 2, Wo, Cin), axis=1)         # pool along H
    x = x.astype(jnp.bfloat16)                             # (Ho, Wo, Cin)

    def im2col(t):
        # t: (Ho, Wo, C) bf16 -> (Ho*Wo, 9*C) patches with a zero 1-px halo.
        C = t.shape[-1]
        zr = jnp.zeros((1, Wo, C), t.dtype)
        zc = jnp.zeros((Ho + 2, 1, C), t.dtype)
        p = jnp.concatenate([zr, t, zr], axis=0)           # (Ho+2, Wo,   C)
        p = jnp.concatenate([zc, p, zc], axis=1)           # (Ho+2, Wo+2, C)
        taps = [p[dy:dy + Ho, dx:dx + Wo, :]               # K order (ky,kx,c)
                for dy in range(3) for dx in range(3)]
        return jnp.concatenate(taps, axis=-1).reshape(Ho * Wo, 9 * C)

    # --- conv1 + folded BN + ReLU: single MXU dot, K = 9*Cin ----------------
    a1 = jnp.dot(im2col(x), w1_ref[...],
                 preferred_element_type=jnp.float32)       # (Ho*Wo, Cmid) f32
    y1 = jnp.maximum(a1 * s1_ref[...] + b1_ref[...], 0.0)

    # --- conv2 + folded BN + ReLU, computed directly as (Cout, Ho*Wo) so the
    #     store is lane-dense and already in NCHW layout (no transpose). -----
    p2 = im2col(y1.reshape(Ho, Wo, Cmid).astype(jnp.bfloat16))
    a2 = lax.dot_general(w2_ref[...], p2, (((1,), (1,)), ((), ())),
                         preferred_element_type=jnp.float32)   # (Cout, Ho*Wo)
    y2 = jnp.maximum(a2 * s2_ref[...] + b2_ref[...], 0.0)

    o_ref[0] = y2.astype(o_ref.dtype)


# ------------------------------- wrapper ------------------------------------

def down_forward(x_nchw, ops):
    # x_nchw: (B, Cin, H, W) like PyTorch; returns (B, Cout, H//2, W//2).
    B, Cin, H, W = x_nchw.shape
    assert H % 2 == 0 and W % 2 == 0, "MaxPool2d(2) needs even H and W"
    Ho, Wo = H // 2, W // 2
    Cmid = ops["w1"].shape[1]
    Cout = ops["w2"].shape[0]

    x_flat = x_nchw.reshape(B, Cin, H * W)        # free (metadata-only)

    out_flat = pl.pallas_call(
        functools.partial(_down_kernel, H, W),
        out_shape=jax.ShapeDtypeStruct((B, Cout, Ho * Wo), x_nchw.dtype),
        grid=(B,),
        in_specs=[
            pl.BlockSpec((1, Cin, H * W), lambda b: (b, 0, 0)),
            pl.BlockSpec((9 * Cin, Cmid), lambda b: (0, 0)),
            pl.BlockSpec((1, Cmid), lambda b: (0, 0)),
            pl.BlockSpec((1, Cmid), lambda b: (0, 0)),
            pl.BlockSpec((Cout, 9 * Cmid), lambda b: (0, 0)),
            pl.BlockSpec((Cout, 1), lambda b: (0, 0)),
            pl.BlockSpec((Cout, 1), lambda b: (0, 0)),
        ],
        out_specs=pl.BlockSpec((1, Cout, Ho * Wo), lambda b: (b, 0, 0)),
        compiler_params=pltpu.CompilerParams(
            dimension_semantics=("parallel",)),   # B=2 feeds both v7x TCs
    )(x_flat, ops["w1"], ops["s1"], ops["b1"],
      ops["w2"], ops["s2"], ops["b2"])

    return out_flat.reshape(B, Cout, Ho, Wo)      # free (metadata-only)


# ------------------------------ parameters ----------------------------------

def fold_bn(gamma, beta, mean, var, eps=1e-5):
    scale = gamma / jnp.sqrt(var + eps)
    return scale, beta - mean * scale


def init_down_params(key, in_channels, out_channels, mid_channels=None):
    # PyTorch-style parameters: Conv2d weights in OIHW (no bias), BatchNorm2d
    # affine params + running statistics (eval mode, deterministic).
    if mid_channels is None:
        mid_channels = out_channels
    ks = jax.random.split(key, 10)
    p = {}
    p["w1_oihw"] = 0.1 * jax.random.normal(
        ks[0], (mid_channels, in_channels, 3, 3), jnp.float32)
    p["w2_oihw"] = 0.1 * jax.random.normal(
        ks[1], (out_channels, mid_channels, 3, 3), jnp.float32)
    p["g1"] = 1.0 + 0.1 * jax.random.normal(ks[2], (mid_channels,), jnp.float32)
    p["be1"] = 0.1 * jax.random.normal(ks[3], (mid_channels,), jnp.float32)
    p["m1"] = 0.05 * jax.random.normal(ks[4], (mid_channels,), jnp.float32)
    p["v1"] = 1.0 + 0.1 * jax.random.uniform(ks[5], (mid_channels,), jnp.float32)
    p["g2"] = 1.0 + 0.1 * jax.random.normal(ks[6], (out_channels,), jnp.float32)
    p["be2"] = 0.1 * jax.random.normal(ks[7], (out_channels,), jnp.float32)
    p["m2"] = 0.05 * jax.random.normal(ks[8], (out_channels,), jnp.float32)
    p["v2"] = 1.0 + 0.1 * jax.random.uniform(ks[9], (out_channels,), jnp.float32)
    return p


def prepare_down_operands(p):
    # Fold BN (inference) into per-channel scale/bias and put conv weights in
    # the im2col layouts expected by the kernel, cast to bf16 for the MXU.
    cmid, cin = p["w1_oihw"].shape[:2]
    cout = p["w2_oihw"].shape[0]
    # conv1: (9*Cin, Cmid), K row order (ky, kx, cin)  -- OIHW -> HWIO -> flat
    w1 = jnp.transpose(p["w1_oihw"], (2, 3, 1, 0)).reshape(9 * cin, cmid)
    # conv2: (Cout, 9*Cmid), K col order (ky, kx, cmid) -- OIHW -> OHWI -> flat
    w2 = jnp.transpose(p["w2_oihw"], (0, 2, 3, 1)).reshape(cout, 9 * cmid)
    s1, b1 = fold_bn(p["g1"], p["be1"], p["m1"], p["v1"])
    s2, b2 = fold_bn(p["g2"], p["be2"], p["m2"], p["v2"])
    return {
        "w1": w1.astype(jnp.bfloat16),
        "s1": s1.reshape(1, cmid), "b1": b1.reshape(1, cmid),
        "w2": w2.astype(jnp.bfloat16),
        "s2": s2.reshape(cout, 1), "b2": b2.reshape(cout, 1),
    }


# ----------------------------- pure-JAX reference ----------------------------

def _ref_forward(x_nchw, p):
    # Mirrors the kernel numerics: f32 maxpool, bf16 conv operands with f32
    # accumulation, folded eval-mode BN, ReLU.
    x = jnp.transpose(x_nchw, (0, 2, 3, 1))
    x = lax.reduce_window(x, -jnp.inf, lax.max,
                          (1, 2, 2, 1), (1, 2, 2, 1), "VALID")
    s1, b1 = fold_bn(p["g1"], p["be1"], p["m1"], p["v1"])
    s2, b2 = fold_bn(p["g2"], p["be2"], p["m2"], p["v2"])

    def cbr(x, w_oihw, s, b):
        w_hwio = jnp.transpose(w_oihw, (2, 3, 1, 0))
        y = lax.conv_general_dilated(
            x.astype(jnp.bfloat16), w_hwio.astype(jnp.bfloat16),
            window_strides=(1, 1), padding="SAME",
            dimension_numbers=("NHWC", "HWIO", "NHWC"),
            preferred_element_type=jnp.float32)
        return jnp.maximum(y * s[None, None, None, :] + b[None, None, None, :],
                           0.0)

    x = cbr(x, p["w1_oihw"], s1, b1)
    x = cbr(x, p["w2_oihw"], s2, b2)
    return jnp.transpose(x, (0, 3, 1, 2))


# ------------------------------------ main -----------------------------------

if __name__ == "__main__":
    key = jax.random.PRNGKey(0)
    k_x, k_p = jax.random.split(key)

    B, Cin, H, W = 2, 4, 16, 16
    Cout = 8
    x = jax.random.normal(k_x, (B, Cin, H, W), jnp.float32)
    params = init_down_params(k_p, Cin, Cout)
    ops = prepare_down_operands(params)

    fwd = jax.jit(down_forward)
    out = jax.block_until_ready(fwd(x, ops))
    assert out.shape == (B, Cout, H // 2, W // 2), out.shape

    ref = jax.block_until_ready(_ref_forward(x, params))
    max_err = float(jnp.max(jnp.abs(out - ref)))
    assert jnp.allclose(out, ref, atol=1e-2, rtol=1e-2), max_err

    print("KERNEL_OK")
</pallas_src>

<mosaic_0001>
module attributes {stable_mosaic.version = 11 : i64} {
  func.func @_down_kernel(%arg0: i32, %arg1: memref<1x4x256xf32, #tpu.memory_space<vmem>>, %arg2: memref<36x8xbf16, #tpu.memory_space<vmem>>, %arg3: memref<1x8xf32, #tpu.memory_space<vmem>>, %arg4: memref<1x8xf32, #tpu.memory_space<vmem>>, %arg5: memref<8x72xbf16, #tpu.memory_space<vmem>>, %arg6: memref<8x1xf32, #tpu.memory_space<vmem>>, %arg7: memref<8x1xf32, #tpu.memory_space<vmem>>, %arg8: memref<1x8x64xf32, #tpu.memory_space<vmem>>) attributes {dimension_semantics = [#tpu.dimension_semantics<parallel>], iteration_bounds = array<i64: 2>, scalar_prefetch = 0 : i64, scratch_operands = 0 : i64, tpu.core_type = #tpu.core_type<tc>, window_params = [{transform_indices = @transform_0, window_bounds = array<i64: 1, 4, 256>}, {pipeline_mode = #tpu.pipeline_mode<synchronous>, transform_indices = @transform_1, window_bounds = array<i64: 36, 8>}, {pipeline_mode = #tpu.pipeline_mode<synchronous>, transform_indices = @transform_2, window_bounds = array<i64: 1, 8>}, {pipeline_mode = #tpu.pipeline_mode<synchronous>, transform_indices = @transform_3, window_bounds = array<i64: 1, 8>}, {pipeline_mode = #tpu.pipeline_mode<synchronous>, transform_indices = @transform_4, window_bounds = array<i64: 8, 72>}, {pipeline_mode = #tpu.pipeline_mode<synchronous>, transform_indices = @transform_5, window_bounds = array<i64: 8, 1>}, {pipeline_mode = #tpu.pipeline_mode<synchronous>, transform_indices = @transform_6, window_bounds = array<i64: 8, 1>}, {transform_indices = @transform_7, window_bounds = array<i64: 1, 8, 64>}]} {
    %c0 = arith.constant 0 : index
    %c0_0 = arith.constant 0 : index
    %c0_1 = arith.constant 0 : index
    %0 = vector.load %arg1[%c0, %c0_0, %c0_1] : memref<1x4x256xf32, #tpu.memory_space<vmem>>, vector<1x4x256xf32>
    %1 = vector.shape_cast %0 : vector<1x4x256xf32> to vector<4x256xf32>
    %cst = arith.constant 0.000000e+00 : f32
    %2 = vector.broadcast %cst : f32 to vector<4x256xf32>
    %3 = tpu.concatenate %1, %2 in 0 : vector<4x256xf32>, vector<4x256xf32> -> vector<8x256xf32>
    %4 = tpu.transpose %3, [1, 0] : vector<8x256xf32> -> vector<256x8xf32>
    %5 = vector.extract_strided_slice %4 {offsets = [0, 0], sizes = [256, 4], strides = [1, 1]} : vector<256x8xf32> to vector<256x4xf32>
    %6 = vector.shape_cast %5 : vector<256x4xf32> to vector<128x2x4xf32>
    %cst_2 = arith.constant dense<0xFF800000> : vector<128x4xf32>
    %7 = vector.multi_reduction <maximumf>, %6, %cst_2 [1] : vector<128x2x4xf32> to vector<128x4xf32>
    %8 = vector.shape_cast %7 : vector<128x4xf32> to vector<8x2x8x4xf32>
    %cst_3 = arith.constant dense<0xFF800000> : vector<8x8x4xf32>
    %9 = vector.multi_reduction <maximumf>, %8, %cst_3 [1] : vector<8x2x8x4xf32> to vector<8x8x4xf32>
    %10 = arith.truncf %9 : vector<8x8x4xf32> to vector<8x8x4xbf16>
    %cst_4 = arith.constant 0.000000e+00 : bf16
    %11 = vector.broadcast %cst_4 : bf16 to vector<1x8x4xbf16>
    %cst_5 = arith.constant 0.000000e+00 : bf16
    %12 = vector.broadcast %cst_5 : bf16 to vector<10x1x4xbf16>
    %13 = tpu.concatenate %11, %10, %11 in 0 : vector<1x8x4xbf16>, vector<8x8x4xbf16>, vector<1x8x4xbf16> -> vector<10x8x4xbf16>
    %14 = tpu.concatenate %12, %13, %12 in 1 : vector<10x1x4xbf16>, vector<10x8x4xbf16>, vector<10x1x4xbf16> -> vector<10x10x4xbf16>
    %15 = vector.extract_strided_slice %14 {offsets = [0, 0, 0], sizes = [8, 8, 4], strides = [1, 1, 1]} : vector<10x10x4xbf16> to vector<8x8x4xbf16>
    %16 = vector.extract_strided_slice %14 {offsets = [0, 1, 0], sizes = [8, 8, 4], strides = [1, 1, 1]} : vector<10x10x4xbf16> to vector<8x8x4xbf16>
    %17 = vector.extract_strided_slice %14 {offsets = [0, 2, 0], sizes = [8, 8, 4], strides = [1, 1, 1]} : vector<10x10x4xbf16> to vector<8x8x4xbf16>
    %18 = vector.extract_strided_slice %14 {offsets = [1, 0, 0], sizes = [8, 8, 4], strides = [1, 1, 1]} : vector<10x10x4xbf16> to vector<8x8x4xbf16>
    %19 = vector.extract_strided_slice %14 {offsets = [1, 1, 0], sizes = [8, 8, 4], strides = [1, 1, 1]} : vector<10x10x4xbf16> to vector<8x8x4xbf16>
    %20 = vector.extract_strided_slice %14 {offsets = [1, 2, 0], sizes = [8, 8, 4], strides = [1, 1, 1]} : vector<10x10x4xbf16> to vector<8x8x4xbf16>
    %21 = vector.extract_strided_slice %14 {offsets = [2, 0, 0], sizes = [8, 8, 4], strides = [1, 1, 1]} : vector<10x10x4xbf16> to vector<8x8x4xbf16>
    %22 = vector.extract_strided_slice %14 {offsets = [2, 1, 0], sizes = [8, 8, 4], strides = [1, 1, 1]} : vector<10x10x4xbf16> to vector<8x8x4xbf16>
    %23 = vector.extract_strided_slice %14 {offsets = [2, 2, 0], sizes = [8, 8, 4], strides = [1, 1, 1]} : vector<10x10x4xbf16> to vector<8x8x4xbf16>
    %24 = tpu.concatenate %15, %16, %17, %18, %19, %20, %21, %22, %23 in 2 : vector<8x8x4xbf16>, vector<8x8x4xbf16>, vector<8x8x4xbf16>, vector<8x8x4xbf16>, vector<8x8x4xbf16>, vector<8x8x4xbf16>, vector<8x8x4xbf16>, vector<8x8x4xbf16>, vector<8x8x4xbf16> -> vector<8x8x36xbf16>
    %25 = vector.shape_cast %24 : vector<8x8x36xbf16> to vector<64x36xbf16>
    %c0_6 = arith.constant 0 : index
    %c0_7 = arith.constant 0 : index
    %26 = vector.load %arg2[%c0_6, %c0_7] : memref<36x8xbf16, #tpu.memory_space<vmem>>, vector<36x8xbf16>
    %cst_8 = arith.constant dense<0.000000e+00> : vector<64x8xf32>
    %27 = tpu.matmul %25, %26, %cst_8 {dimension_numbers = #tpu.dot_dimension_numbers<[1], [0], [0], [1], [0, 0, 1, 1], [], []>} : vector<64x36xbf16>, vector<36x8xbf16>, vector<64x8xf32> -> vector<64x8xf32>
    %c0_9 = arith.constant 0 : index
    %c0_10 = arith.constant 0 : index
    %28 = vector.load %arg3[%c0_9, %c0_10] : memref<1x8xf32, #tpu.memory_space<vmem>>, vector<1x8xf32>
    %29 = vector.broadcast %28 : vector<1x8xf32> to vector<64x8xf32>
    %30 = arith.mulf %27, %29 : vector<64x8xf32>
    %c0_11 = arith.constant 0 : index
    %c0_12 = arith.constant 0 : index
    %31 = vector.load %arg4[%c0_11, %c0_12] : memref<1x8xf32, #tpu.memory_space<vmem>>, vector<1x8xf32>
    %32 = vector.broadcast %31 : vector<1x8xf32> to vector<64x8xf32>
    %33 = arith.addf %30, %32 : vector<64x8xf32>
    %cst_13 = arith.constant 0.000000e+00 : f32
    %34 = vector.broadcast %cst_13 : f32 to vector<64x8xf32>
    %35 = arith.maximumf %33, %34 : vector<64x8xf32>
    %36 = vector.shape_cast %35 : vector<64x8xf32> to vector<8x8x8xf32>
    %37 = arith.truncf %36 : vector<8x8x8xf32> to vector<8x8x8xbf16>
    %cst_14 = arith.constant 0.000000e+00 : bf16
    %38 = vector.broadcast %cst_14 : bf16 to vector<1x8x8xbf16>
    %cst_15 = arith.constant 0.000000e+00 : bf16
    %39 = vector.broadcast %cst_15 : bf16 to vector<10x1x8xbf16>
    %40 = tpu.concatenate %38, %37, %38 in 0 : vector<1x8x8xbf16>, vector<8x8x8xbf16>, vector<1x8x8xbf16> -> vector<10x8x8xbf16>
    %41 = tpu.concatenate %39, %40, %39 in 1 : vector<10x1x8xbf16>, vector<10x8x8xbf16>, vector<10x1x8xbf16> -> vector<10x10x8xbf16>
    %42 = vector.extract_strided_slice %41 {offsets = [0, 0, 0], sizes = [8, 8, 8], strides = [1, 1, 1]} : vector<10x10x8xbf16> to vector<8x8x8xbf16>
    %43 = vector.extract_strided_slice %41 {offsets = [0, 1, 0], sizes = [8, 8, 8], strides = [1, 1, 1]} : vector<10x10x8xbf16> to vector<8x8x8xbf16>
    %44 = vector.extract_strided_slice %41 {offsets = [0, 2, 0], sizes = [8, 8, 8], strides = [1, 1, 1]} : vector<10x10x8xbf16> to vector<8x8x8xbf16>
    %45 = vector.extract_strided_slice %41 {offsets = [1, 0, 0], sizes = [8, 8, 8], strides = [1, 1, 1]} : vector<10x10x8xbf16> to vector<8x8x8xbf16>
    %46 = vector.extract_strided_slice %41 {offsets = [1, 1, 0], sizes = [8, 8, 8], strides = [1, 1, 1]} : vector<10x10x8xbf16> to vector<8x8x8xbf16>
    %47 = vector.extract_strided_slice %41 {offsets = [1, 2, 0], sizes = [8, 8, 8], strides = [1, 1, 1]} : vector<10x10x8xbf16> to vector<8x8x8xbf16>
    %48 = vector.extract_strided_slice %41 {offsets = [2, 0, 0], sizes = [8, 8, 8], strides = [1, 1, 1]} : vector<10x10x8xbf16> to vector<8x8x8xbf16>
    %49 = vector.extract_strided_slice %41 {offsets = [2, 1, 0], sizes = [8, 8, 8], strides = [1, 1, 1]} : vector<10x10x8xbf16> to vector<8x8x8xbf16>
    %50 = vector.extract_strided_slice %41 {offsets = [2, 2, 0], sizes = [8, 8, 8], strides = [1, 1, 1]} : vector<10x10x8xbf16> to vector<8x8x8xbf16>
    %51 = tpu.concatenate %42, %43, %44, %45, %46, %47, %48, %49, %50 in 2 : vector<8x8x8xbf16>, vector<8x8x8xbf16>, vector<8x8x8xbf16>, vector<8x8x8xbf16>, vector<8x8x8xbf16>, vector<8x8x8xbf16>, vector<8x8x8xbf16>, vector<8x8x8xbf16>, vector<8x8x8xbf16> -> vector<8x8x72xbf16>
    %52 = vector.shape_cast %51 : vector<8x8x72xbf16> to vector<64x72xbf16>
    %c0_16 = arith.constant 0 : index
    %c0_17 = arith.constant 0 : index
    %53 = vector.load %arg5[%c0_16, %c0_17] : memref<8x72xbf16, #tpu.memory_space<vmem>>, vector<8x72xbf16>
    %cst_18 = arith.constant dense<0.000000e+00> : vector<8x64xf32>
    %54 = tpu.matmul %53, %52, %cst_18 {dimension_numbers = #tpu.dot_dimension_numbers<[1], [1], [0], [0], [0, 0, 1, 0], [], []>} : vector<8x72xbf16>, vector<64x72xbf16>, vector<8x64xf32> -> vector<8x64xf32>
    %c0_19 = arith.constant 0 : index
    %c0_20 = arith.constant 0 : index
    %55 = vector.load %arg6[%c0_19, %c0_20] : memref<8x1xf32, #tpu.memory_space<vmem>>, vector<8x1xf32>
    %56 = vector.broadcast %55 : vector<8x1xf32> to vector<8x64xf32>
    %57 = arith.mulf %54, %56 : vector<8x64xf32>
    %c0_21 = arith.constant 0 : index
    %c0_22 = arith.constant 0 : index
    %58 = vector.load %arg7[%c0_21, %c0_22] : memref<8x1xf32, #tpu.memory_space<vmem>>, vector<8x1xf32>
    %59 = vector.broadcast %58 : vector<8x1xf32> to vector<8x64xf32>
    %60 = arith.addf %57, %59 : vector<8x64xf32>
    %cst_23 = arith.constant 0.000000e+00 : f32
    %61 = vector.broadcast %cst_23 : f32 to vector<8x64xf32>
    %62 = arith.maximumf %60, %61 : vector<8x64xf32>
    %c0_24 = arith.constant 0 : index
    %c0_25 = arith.constant 0 : index
    %c0_26 = arith.constant 0 : index
    %63 = vector.load %arg8[%c0_24, %c0_25, %c0_26] : memref<1x8x64xf32, #tpu.memory_space<vmem>>, vector<1x8x64xf32>
    %64 = vector.shape_cast %63 : vector<1x8x64xf32> to vector<8x64xf32>
    %65 = vector.shape_cast %62 : vector<8x64xf32> to vector<1x8x64xf32>
    tpu.vector_store %arg8[%c0_24, %c0_25, %c0_26], %65 {strides = array<i32>} : memref<1x8x64xf32, #tpu.memory_space<vmem>>, vector<1x8x64xf32>,
    return
  }
  func.func @transform_0(%arg0: i32) -> (i32, i32, i32) {
    %c0_i32 = arith.constant 0 : i32
    %c0_i32_0 = arith.constant 0 : i32
    %c0_i32_1 = arith.constant 0 : i32
    return %arg0, %c0_i32, %c0_i32_0 : i32, i32, i32
  }
  func.func @transform_1(%arg0: i32) -> (i32, i32) {
    %c0_i32 = arith.constant 0 : i32
    %c0_i32_0 = arith.constant 0 : i32
    %c0_i32_1 = arith.constant 0 : i32
    return %c0_i32, %c0_i32_0 : i32, i32
  }
  func.func @transform_2(%arg0: i32) -> (i32, i32) {
    %c0_i32 = arith.constant 0 : i32
    %c0_i32_0 = arith.constant 0 : i32
    %c0_i32_1 = arith.constant 0 : i32
    return %c0_i32, %c0_i32_0 : i32, i32
  }
  func.func @transform_3(%arg0: i32) -> (i32, i32) {
    %c0_i32 = arith.constant 0 : i32
    %c0_i32_0 = arith.constant 0 : i32
    %c0_i32_1 = arith.constant 0 : i32
    return %c0_i32, %c0_i32_0 : i32, i32
  }
  func.func @transform_4(%arg0: i32) -> (i32, i32) {
    %c0_i32 = arith.constant 0 : i32
    %c0_i32_0 = arith.constant 0 : i32
    %c0_i32_1 = arith.constant 0 : i32
    return %c0_i32, %c0_i32_0 : i32, i32
  }
  func.func @transform_5(%arg0: i32) -> (i32, i32) {
    %c0_i32 = arith.constant 0 : i32
    %c0_i32_0 = arith.constant 0 : i32
    %c0_i32_1 = arith.constant 0 : i32
    return %c0_i32, %c0_i32_0 : i32, i32
  }
  func.func @transform_6(%arg0: i32) -> (i32, i32) {
    %c0_i32 = arith.constant 0 : i32
    %c0_i32_0 = arith.constant 0 : i32
    %c0_i32_1 = arith.constant 0 : i32
    return %c0_i32, %c0_i32_0 : i32, i32
  }
  func.func @transform_7(%arg0: i32) -> (i32, i32, i32) {
    %c0_i32 = arith.constant 0 : i32
    %c0_i32_0 = arith.constant 0 : i32
    %c0_i32_1 = arith.constant 0 : i32
    return %arg0, %c0_i32, %c0_i32_0 : i32, i32, i32
  }
}

</mosaic_0001>

<llo_original>
// kernel: down_forward.1
$region0: #{down_forward.1}
  #allocation0 [shape = 'u32[]', space=smem, size = 0x4, offset = 0x4, fixed_abs, tag = 'smem constant byte address 0x4 - core index']
  #allocation1 [shape = 'u32[144,128]{1,0:T(1,128)}', space=vmem, size = 0x12000, scoped, tag = 'internal scratch']
  %s0 = inlined_call_operand.vmem [shape: f32[2,4,256], index: 0, kind: input, shape index: {}]
  %s1 = inlined_call_operand.vmem [shape: bf16[36,8], index: 1, kind: input, shape index: {}]
  %s2 = inlined_call_operand.vmem [shape: f32[1,8], index: 2, kind: input, shape index: {}]
  %s3 = inlined_call_operand.vmem [shape: f32[1,8], index: 3, kind: input, shape index: {}]
  %s4 = inlined_call_operand.vmem [shape: bf16[8,72], index: 4, kind: input, shape index: {}]
  %s5 = inlined_call_operand.vmem [shape: f32[8,1], index: 5, kind: input, shape index: {}]
  %s6 = inlined_call_operand.vmem [shape: f32[8,1], index: 6, kind: input, shape index: {}]
  %s7 = inlined_call_operand.vmem [shape: f32[2,8,64], index: 7, kind: output, shape index: {}]
  %s8 = sld [smem:[#allocation0]]
  $region61: #{down_forward.1} parent=0
    _
  %s10 = ssub.s32 1, %s8
  %s11 = scalar_select 0, %s10, %s8
  loop: start=0, step=1, limit=4
  $region2: #{down_forward.1} parent=0 // loop_pre_header
    _
  $region3: #{down_forward.1} parent=0 // loop_header
    %s13 = sphi 0, %s17
    %p14 = scmp.ge.s32.totalorder %s13, 4
    %s23 = sphi 0, %s25
    %s26 = sphi 0, %s23
    %s27 = sphi 0, %s26
    %s43 = sphi 0, %s27
    %s47 = sphi 0, %s47
    %s49 = sphi 0, %s47
    %s50 = sphi 0, %s49
    %s64 = sphi 0, %s50
    %s68 = sphi 0, %s68
    %s70 = sphi 0, %s68
    %s71 = sphi 0, %s70
    %s85 = sphi 0, %s71
    %s89 = sphi 0, %s89
    %s91 = sphi 0, %s89
    %s92 = sphi 0, %s91
    %s106 = sphi 0, %s92
    %s110 = sphi 0, %s110
    %s112 = sphi 0, %s110
    %s113 = sphi 0, %s112
    %s127 = sphi 0, %s113
    %s131 = sphi 0, %s131
    %s133 = sphi 0, %s131
    %s134 = sphi 0, %s133
    %s148 = sphi 0, %s134
    %s152 = sphi 0, %s152
    %s154 = sphi 0, %s152
    %s155 = sphi 0, %s154
    %s169 = sphi 0, %s155
    %s175 = sphi 0, %s177
    %s178 = sphi 0, %s175
    %s179 = sphi 0, %s178
    %s195 = sphi 0, %s179
  $region4: #{down_forward.1} parent=0 // loop_header_branch
    %16 = sbr.rel (%p14) target = $region8
  $region5: #{down_forward.1} parent=0 // loop_body
    %s18 = ssub.s32 %s13, 1
    %s19 = ssub.s32 %s13, 2
    %s20 = sadd.s32 %s13, 1
    %s21 = ssub.s32 %s13, %s20
    %p22 = scmp.eq.s32.totalorder %s21, 0
    %s24 = sadd.s32 %s23, 1
    %s25 = scalar_select %p22, %s23, %s24
    %p28 = pneg %p22
    %p29 = scmp.eq.s32.totalorder %s13, 1
    %p30 = por %p28, %p29
    %p31 = scmp.ne.s32.totalorder %s23, %s26
    %p32 = scmp.eq.s32.totalorder %s13, 0
    %p33 = por %p31, %p32
    %p34 = scmp.ne.s32.totalorder %s23, %s26
    %p35 = scmp.eq.s32.totalorder %s18, 1
    %p36 = por %p34, %p35
    %p37 = scmp.ne.s32.totalorder %s26, %s27
    %p38 = scmp.eq.s32.totalorder %s18, 0
    %p39 = por %p37, %p38
    %p40 = scmp.ne.s32.totalorder %s26, %s27
    %p41 = scmp.eq.s32.totalorder %s19, 1
    %p42 = por %p40, %p41
    %p44 = scmp.ne.s32.totalorder %s27, %s43
    %p45 = scmp.eq.s32.totalorder %s19, 0
    %p46 = por %p44, %p45
    %s48 = sadd.s32 %s47, 1
    %p51 = scmp.eq.s32.totalorder %s13, 1
    %p52 = scmp.ne.s32.totalorder %s47, %s49
    %p53 = scmp.eq.s32.totalorder %s13, 0
    %p54 = por %p52, %p53
    %p55 = scmp.ne.s32.totalorder %s47, %s49
    %p56 = scmp.eq.s32.totalorder %s18, 1
    %p57 = por %p55, %p56
    %p58 = scmp.ne.s32.totalorder %s49, %s50
    %p59 = scmp.eq.s32.totalorder %s18, 0
    %p60 = por %p58, %p59
    %p61 = scmp.ne.s32.totalorder %s49, %s50
    %p62 = scmp.eq.s32.totalorder %s19, 1
    %p63 = por %p61, %p62
    %p65 = scmp.ne.s32.totalorder %s50, %s64
    %p66 = scmp.eq.s32.totalorder %s19, 0
    %p67 = por %p65, %p66
    %s69 = sadd.s32 %s68, 1
    %p72 = scmp.eq.s32.totalorder %s13, 1
    %p73 = scmp.ne.s32.totalorder %s68, %s70
    %p74 = scmp.eq.s32.totalorder %s13, 0
    %p75 = por %p73, %p74
    %p76 = scmp.ne.s32.totalorder %s68, %s70
    %p77 = scmp.eq.s32.totalorder %s18, 1
    %p78 = por %p76, %p77
    %p79 = scmp.ne.s32.totalorder %s70, %s71
    %p80 = scmp.eq.s32.totalorder %s18, 0
    %p81 = por %p79, %p80
    %p82 = scmp.ne.s32.totalorder %s70, %s71
    %p83 = scmp.eq.s32.totalorder %s19, 1
    %p84 = por %p82, %p83
    %p86 = scmp.ne.s32.totalorder %s71, %s85
    %p87 = scmp.eq.s32.totalorder %s19, 0
    %p88 = por %p86, %p87
    %s90 = sadd.s32 %s89, 1
    %p93 = scmp.eq.s32.totalorder %s13, 1
    %p94 = scmp.ne.s32.totalorder %s89, %s91
    %p95 = scmp.eq.s32.totalorder %s13, 0
    %p96 = por %p94, %p95
    %p97 = scmp.ne.s32.totalorder %s89, %s91
    %p98 = scmp.eq.s32.totalorder %s18, 1
    %p99 = por %p97, %p98
    %p100 = scmp.ne.s32.totalorder %s91, %s92
    %p101 = scmp.eq.s32.totalorder %s18, 0
    %p102 = por %p100, %p101
    %p103 = scmp.ne.s32.totalorder %s91, %s92
    %p104 = scmp.eq.s32.totalorder %s19, 1
    %p105 = por %p103, %p104
    %p107 = scmp.ne.s32.totalorder %s92, %s106
    %p108 = scmp.eq.s32.totalorder %s19, 0
    %p109 = por %p107, %p108
    %s111 = sadd.s32 %s110, 1
    %p114 = scmp.eq.s32.totalorder %s13, 1
    %p115 = scmp.ne.s32.totalorder %s110, %s112
    %p116 = scmp.eq.s32.totalorder %s13, 0
    %p117 = por %p115, %p116
    %p118 = scmp.ne.s32.totalorder %s110, %s112
    %p119 = scmp.eq.s32.totalorder %s18, 1
    %p120 = por %p118, %p119
    %p121 = scmp.ne.s32.totalorder %s112, %s113
    %p122 = scmp.eq.s32.totalorder %s18, 0
    %p123 = por %p121, %p122
    %p124 = scmp.ne.s32.totalorder %s112, %s113
    %p125 = scmp.eq.s32.totalorder %s19, 1
    %p126 = por %p124, %p125
    %p128 = scmp.ne.s32.totalorder %s113, %s127
    %p129 = scmp.eq.s32.totalorder %s19, 0
    %p130 = por %p128, %p129
    %s132 = sadd.s32 %s131, 1
    %p135 = scmp.eq.s32.totalorder %s13, 1
    %p136 = scmp.ne.s32.totalorder %s131, %s133
    %p137 = scmp.eq.s32.totalorder %s13, 0
    %p138 = por %p136, %p137
    %p139 = scmp.ne.s32.totalorder %s131, %s133
    %p140 = scmp.eq.s32.totalorder %s18, 1
    %p141 = por %p139, %p140
    %p142 = scmp.ne.s32.totalorder %s133, %s134
    %p143 = scmp.eq.s32.totalorder %s18, 0
    %p144 = por %p142, %p143
    %p145 = scmp.ne.s32.totalorder %s133, %s134
    %p146 = scmp.eq.s32.totalorder %s19, 1
    %p147 = por %p145, %p146
    %p149 = scmp.ne.s32.totalorder %s134, %s148
    %p150 = scmp.eq.s32.totalorder %s19, 0
    %p151 = por %p149, %p150
    %s153 = sadd.s32 %s152, 1
    %p156 = scmp.eq.s32.totalorder %s13, 1
    %p157 = scmp.ne.s32.totalorder %s152, %s154
    %p158 = scmp.eq.s32.totalorder %s13, 0
    %p159 = por %p157, %p158
    %p160 = scmp.ne.s32.totalorder %s152, %s154
    %p161 = scmp.eq.s32.totalorder %s18, 1
    %p162 = por %p160, %p161
    %p163 = scmp.ne.s32.totalorder %s154, %s155
    %p164 = scmp.eq.s32.totalorder %s18, 0
    %p165 = por %p163, %p164
    %p166 = scmp.ne.s32.totalorder %s154, %s155
    %p167 = scmp.eq.s32.totalorder %s19, 1
    %p168 = por %p166, %p167
    %p170 = scmp.ne.s32.totalorder %s155, %s169
    %p171 = scmp.eq.s32.totalorder %s19, 0
    %p172 = por %p170, %p171
    %s173 = ssub.s32 %s13, %s20
    %p174 = scmp.eq.s32.totalorder %s173, 0
    %s176 = sadd.s32 %s175, 1
    %s177 = scalar_select %p174, %s175, %s176
    %p180 = pneg %p174
    %p181 = scmp.eq.s32.totalorder %s13, 1
    %p182 = por %p180, %p181
    %p183 = scmp.ne.s32.totalorder %s175, %s178
    %p184 = scmp.eq.s32.totalorder %s13, 0
    %p185 = por %p183, %p184
    %p186 = scmp.ne.s32.totalorder %s175, %s178
    %p187 = scmp.eq.s32.totalorder %s18, 1
    %p188 = por %p186, %p187
    %p189 = scmp.ne.s32.totalorder %s178, %s179
    %p190 = scmp.eq.s32.totalorder %s18, 0
    %p191 = por %p189, %p190
    %p192 = scmp.ne.s32.totalorder %s178, %s179
    %p193 = scmp.eq.s32.totalorder %s19, 1
    %p194 = por %p192, %p193
    %p196 = scmp.ne.s32.totalorder %s179, %s195
    %p197 = scmp.eq.s32.totalorder %s19, 0
    %p198 = por %p196, %p197
    %p199 = scmp.le.s32.totalorder 1, %s13
    %p200 = scmp.lt.s32.totalorder %s13, 3
    %p201 = pnand %p199, %p200
    %p202 = pneg %p201
    // Predicated region
    $region9: #{down_forward.1} parent=5 // pred_check
      _
    $region10: #{down_forward.1} parent=5 // pred_check_branch
      %204 = sbr.rel (%p201) target = $region12
    $region11: #{down_forward.1} parent=5 // pred_region
      %s205 = ssub.s32 %s13, 1
      // Predicated region
      $region13: #{down_forward.1} parent=11 // pred_check
        %p206 = pneg %p60
      $region14: #{down_forward.1} parent=11 // pred_check_branch
        %208 = sbr.rel (%p206) target = $region16
      $region15: #{down_forward.1} parent=11 // pred_region
        _
      $region16: #{down_forward.1} parent=11 // pred_fallthru
        _
      // Predicated region
      $region17: #{down_forward.1} parent=11 // pred_check
        %p209 = pneg %p81
      $region18: #{down_forward.1} parent=11 // pred_check_branch
        %211 = sbr.rel (%p209) target = $region20
      $region19: #{down_forward.1} parent=11 // pred_region
        _
      $region20: #{down_forward.1} parent=11 // pred_fallthru
        _
      // Predicated region
      $region21: #{down_forward.1} parent=11 // pred_check
        %p212 = pneg %p102
      $region22: #{down_forward.1} parent=11 // pred_check_branch
        %214 = sbr.rel (%p212) target = $region24
      $region23: #{down_forward.1} parent=11 // pred_region
        _
      $region24: #{down_forward.1} parent=11 // pred_fallthru
        _
      // Predicated region
      $region25: #{down_forward.1} parent=11 // pred_check
        %p215 = pneg %p123
      $region26: #{down_forward.1} parent=11 // pred_check_branch
        %217 = sbr.rel (%p215) target = $region28
      $region27: #{down_forward.1} parent=11 // pred_region
        _
      $region28: #{down_forward.1} parent=11 // pred_fallthru
        _
      // Predicated region
      $region29: #{down_forward.1} parent=11 // pred_check
        %p218 = pneg %p144
      $region30: #{down_forward.1} parent=11 // pred_check_branch
        %220 = sbr.rel (%p218) target = $region32
      $region31: #{down_forward.1} parent=11 // pred_region
        _
      $region32: #{down_forward.1} parent=11 // pred_fallthru
        _
      // Predicated region
      $region33: #{down_forward.1} parent=11 // pred_check
        %p221 = pneg %p165
      $region34: #{down_forward.1} parent=11 // pred_check_branch
        %223 = sbr.rel (%p221) target = $region36
      $region35: #{down_forward.1} parent=11 // pred_region
        _
      $region36: #{down_forward.1} parent=11 // pred_fallthru
        _
    $region12: #{down_forward.1} parent=5 // pred_fallthru
      _
    %p224 = scmp.lt.s32.totalorder %s13, 2
    // Predicated region
    $region37: #{down_forward.1} parent=5 // pred_check
      %p225 = pneg %p224
    $region38: #{down_forward.1} parent=5 // pred_check_branch
      %227 = sbr.rel (%p225) target = $region40
    $region39: #{down_forward.1} parent=5 // pred_region
      // Predicated region
      $region41: #{down_forward.1} parent=39 // pred_check
        %p228 = pneg %p33
      $region42: #{down_forward.1} parent=39 // pred_check_branch
        %230 = sbr.rel (%p228) target = $region44
      $region43: #{down_forward.1} parent=39 // pred_region
        %p231 = scmp.lt.s32.totalorder %s13, 1
        %s232 = scalar_select %p231, %s13, 1
        %s233 = smul.addr %s232, 2
        %s234 = smul.addr %s233, 4
        %s235 = scalar_lea.vmem %s0, %s234
      $region44: #{down_forward.1} parent=39 // pred_fallthru
        _
    $region40: #{down_forward.1} parent=5 // pred_fallthru
      _
    %p236 = scmp.le.s32.totalorder 1, %s13
    %p237 = scmp.lt.s32.totalorder %s13, 3
    %p238 = pnand %p236, %p237
    %p239 = pneg %p238
    // Predicated region
    $region45: #{down_forward.1} parent=5 // pred_check
      _
    $region46: #{down_forward.1} parent=5 // pred_check_branch
      %241 = sbr.rel (%p238) target = $region48
    $region47: #{down_forward.1} parent=5 // pred_region
      %s242 = ssub.s32 %s13, 1
      %p243 = scmp.lt.s32.totalorder %s18, 1
      %s244 = scalar_select %p243, %s18, 1
      %s245 = smul.addr %s244, 2
      %s246 = smul.addr %s245, 4
      %s247 = scalar_lea.vmem %s0, %s246
      %p248 = pneg %p39
      %p249 = pneg %p36
      %p250 = pneg %p60
      %p251 = pneg %p57
      %p252 = pneg %p81
      %p253 = pneg %p78
      %p254 = pneg %p102
      %p255 = pneg %p99
      %p256 = pneg %p123
      %p257 = pneg %p120
      %p258 = pneg %p144
      %p259 = pneg %p141
      %p260 = pneg %p165
      %p261 = pneg %p162
      %p262 = pneg %p191
      %p263 = pneg %p188
      %p264 = scmp.lt.s32.totalorder %s18, 1
      %s265 = scalar_select %p264, %s18, 1
      %s266 = smul.addr %s265, 8
      %s267 = scalar_lea.vmem %s7, %s266
      %p268 = scmp.lt.s32.totalorder %s18, 1
      %s269 = scalar_select %p268, %s18, 1
      %s270 = smul.addr %s269, 2
      %s271 = smul.addr %s270, 4
      %s272 = scalar_lea.vmem %s0, %s271
      %p273 = scmp.lt.s32.totalorder %s18, 1
      %s274 = scalar_select %p273, %s18, 1
      %s275 = smul.addr %s274, 8
      %s276 = scalar_lea.vmem %s7, %s275
      %v278 = vld [vmem:[%s272] sm:$0xff]
      %v280 = vcombine.high %v278, %v278
      %vm282 = vcmask 1043456
      %v283 = vsel %vm282, %v278, 0.0
      %v284 = vsel %vm282, %v280, 0.0
      %285 = vxpose.xlu0.b32.start [1/16] %v283, 128
      %286 = vxpose.xlu0.b32.cont [2/16] 0.0, 128
      %287 = vxpose.xlu0.b32.cont [3/16] 0.0, 128
      %288 = vxpose.xlu0.b32.cont [4/16] 0.0, 128
      %289 = vxpose.xlu0.b32.cont [5/16] 0.0, 128
      %290 = vxpose.xlu0.b32.cont [6/16] 0.0, 128
      %291 = vxpose.xlu0.b32.cont [7/16] 0.0, 128
      %292 = vxpose.xlu0.b32.cont [8/16] 0.0, 128
      %293 = vxpose.xlu0.b32.cont [9/16] 0.0, 128
      %294 = vxpose.xlu0.b32.cont [10/16] 0.0, 128
      %295 = vxpose.xlu0.b32.cont [11/16] 0.0, 128
      %296 = vxpose.xlu0.b32.cont [12/16] 0.0, 128
      %297 = vxpose.xlu0.b32.cont [13/16] 0.0, 128
      %298 = vxpose.xlu0.b32.cont [14/16] 0.0, 128
      %299 = vxpose.xlu0.b32.cont [15/16] 0.0, 128
      %300 = vxpose.xlu0.b32.end [16/16] 0.0, 128
      %v301 = vpop.trf.xlu0
      %v302 = vpop.trf.xlu0
      %v303 = vpop.trf.xlu0
      %v304 = vpop.trf.xlu0
      %v305 = vpop.trf.xlu0
      %v306 = vpop.trf.xlu0
      %v307 = vpop.trf.xlu0
      %v308 = vpop.trf.xlu0
      %v309 = vpop.trf.xlu0
      %v310 = vpop.trf.xlu0
      %v311 = vpop.trf.xlu0
      %v312 = vpop.trf.xlu0
      %v313 = vpop.trf.xlu0
      %v314 = vpop.trf.xlu0
      %v315 = vpop.trf.xlu0
      %v316 = vpop.trf.xlu0
      %317 = vxpose.xlu0.b32.start [1/16] %v284, 128
      %318 = vxpose.xlu0.b32.cont [2/16] 0.0, 128
      %319 = vxpose.xlu0.b32.cont [3/16] 0.0, 128
      %320 = vxpose.xlu0.b32.cont [4/16] 0.0, 128
      %321 = vxpose.xlu0.b32.cont [5/16] 0.0, 128
      %322 = vxpose.xlu0.b32.cont [6/16] 0.0, 128
      %323 = vxpose.xlu0.b32.cont [7/16] 0.0, 128
      %324 = vxpose.xlu0.b32.cont [8/16] 0.0, 128
      %325 = vxpose.xlu0.b32.cont [9/16] 0.0, 128
      %326 = vxpose.xlu0.b32.cont [10/16] 0.0, 128
      %327 = vxpose.xlu0.b32.cont [11/16] 0.0, 128
      %328 = vxpose.xlu0.b32.cont [12/16] 0.0, 128
      %329 = vxpose.xlu0.b32.cont [13/16] 0.0, 128
      %330 = vxpose.xlu0.b32.cont [14/16] 0.0, 128
      %331 = vxpose.xlu0.b32.cont [15/16] 0.0, 128
      %332 = vxpose.xlu0.b32.end [16/16] 0.0, 128
      %v333 = vpop.trf.xlu0
      %v334 = vpop.trf.xlu0
      %v335 = vpop.trf.xlu0
      %v336 = vpop.trf.xlu0
      %v337 = vpop.trf.xlu0
      %v338 = vpop.trf.xlu0
      %v339 = vpop.trf.xlu0
      %v340 = vpop.trf.xlu0
      %v341 = vpop.trf.xlu0
      %v342 = vpop.trf.xlu0
      %v343 = vpop.trf.xlu0
      %v344 = vpop.trf.xlu0
      %v345 = vpop.trf.xlu0
      %v346 = vpop.trf.xlu0
      %v347 = vpop.trf.xlu0
      %v348 = vpop.trf.xlu0
      %v381 = vcombine.high %v301, %v301
      %v383 = vunpack.c.l.s4 1983009808
      %v384 = vunpack.c.0.s8 %v383
      %v385 = vlaneseq
      %v386 = vshrl.u32 %v385, 7
      %v387 = vsub.s32 %v384, %v386
      %v388 = vrot.slane %v301, %v387
      %v390 = vunpack.c.l.s4 1983009808
      %v391 = vunpack.c.0.s8 %v390
      %v392 = vlaneseq
      %v393 = vshrl.u32 %v392, 7
      %v394 = vsub.s32 %v391, %v393
      %v395 = vrot.slane %v381, %v394
      %v396 = vcombine.high %v388, %v388
      %v397 = vcombine.high %v395, %v395
      %v398 = vcombine.high %v302, %v302
      %v400 = vunpack.c.l.s4 1983009808
      %v401 = vunpack.c.0.s8 %v400
      %v402 = vlaneseq
      %v403 = vshrl.u32 %v402, 7
      %v404 = vsub.s32 %v401, %v403
      %v405 = vrot.slane %v302, %v404
      %v407 = vunpack.c.l.s4 1983009808
      %v408 = vunpack.c.0.s8 %v407
      %v409 = vlaneseq
      %v410 = vshrl.u32 %v409, 7
      %v411 = vsub.s32 %v408, %v410
      %v412 = vrot.slane %v398, %v411
      %v413 = vcombine.high %v405, %v405
      %v414 = vcombine.high %v412, %v412
      %v415 = vcombine.high %v303, %v303
      %v417 = vunpack.c.l.s4 1983009808
      %v418 = vunpack.c.0.s8 %v417
      %v419 = vlaneseq
      %v420 = vshrl.u32 %v419, 7
      %v421 = vsub.s32 %v418, %v420
      %v422 = vrot.slane %v303, %v421
      %v424 = vunpack.c.l.s4 1983009808
      %v425 = vunpack.c.0.s8 %v424
      %v426 = vlaneseq
      %v427 = vshrl.u32 %v426, 7
      %v428 = vsub.s32 %v425, %v427
      %v429 = vrot.slane %v415, %v428
      %v430 = vcombine.high %v422, %v422
      %v431 = vcombine.high %v429, %v429
      %v432 = vcombine.high %v304, %v304
      %v434 = vunpack.c.l.s4 1983009808
      %v435 = vunpack.c.0.s8 %v434
      %v436 = vlaneseq
      %v437 = vshrl.u32 %v436, 7
      %v438 = vsub.s32 %v435, %v437
      %v439 = vrot.slane %v304, %v438
      %v441 = vunpack.c.l.s4 1983009808
      %v442 = vunpack.c.0.s8 %v441
      %v443 = vlaneseq
      %v444 = vshrl.u32 %v443, 7
      %v445 = vsub.s32 %v442, %v444
      %v446 = vrot.slane %v432, %v445
      %v447 = vcombine.high %v439, %v439
      %v448 = vcombine.high %v446, %v446
      %v449 = vcombine.high %v305, %v305
      %v451 = vunpack.c.l.s4 1983009808
      %v452 = vunpack.c.0.s8 %v451
      %v453 = vlaneseq
      %v454 = vshrl.u32 %v453, 7
      %v455 = vsub.s32 %v452, %v454
      %v456 = vrot.slane %v305, %v455
      %v458 = vunpack.c.l.s4 1983009808
      %v459 = vunpack.c.0.s8 %v458
      %v460 = vlaneseq
      %v461 = vshrl.u32 %v460, 7
      %v462 = vsub.s32 %v459, %v461
      %v463 = vrot.slane %v449, %v462
      %v464 = vcombine.high %v456, %v456
      %v465 = vcombine.high %v463, %v463
      %v466 = vcombine.high %v306, %v306
      %v468 = vunpack.c.l.s4 1983009808
      %v469 = vunpack.c.0.s8 %v468
      %v470 = vlaneseq
      %v471 = vshrl.u32 %v470, 7
      %v472 = vsub.s32 %v469, %v471
      %v473 = vrot.slane %v306, %v472
      %v475 = vunpack.c.l.s4 1983009808
      %v476 = vunpack.c.0.s8 %v475
      %v477 = vlaneseq
      %v478 = vshrl.u32 %v477, 7
      %v479 = vsub.s32 %v476, %v478
      %v480 = vrot.slane %v466, %v479
      %v481 = vcombine.high %v473, %v473
      %v482 = vcombine.high %v480, %v480
      %v483 = vcombine.high %v307, %v307
      %v485 = vunpack.c.l.s4 1983009808
      %v486 = vunpack.c.0.s8 %v485
      %v487 = vlaneseq
      %v488 = vshrl.u32 %v487, 7
      %v489 = vsub.s32 %v486, %v488
      %v490 = vrot.slane %v307, %v489
      %v492 = vunpack.c.l.s4 1983009808
      %v493 = vunpack.c.0.s8 %v492
      %v494 = vlaneseq
      %v495 = vshrl.u32 %v494, 7
      %v496 = vsub.s32 %v493, %v495
      %v497 = vrot.slane %v483, %v496
      %v498 = vcombine.high %v490, %v490
      %v499 = vcombine.high %v497, %v497
      %v500 = vcombine.high %v308, %v308
      %v502 = vunpack.c.l.s4 1983009808
      %v503 = vunpack.c.0.s8 %v502
      %v504 = vlaneseq
      %v505 = vshrl.u32 %v504, 7
      %v506 = vsub.s32 %v503, %v505
      %v507 = vrot.slane %v308, %v506
      %v509 = vunpack.c.l.s4 1983009808
      %v510 = vunpack.c.0.s8 %v509
      %v511 = vlaneseq
      %v512 = vshrl.u32 %v511, 7
      %v513 = vsub.s32 %v510, %v512
      %v514 = vrot.slane %v500, %v513
      %v515 = vcombine.high %v507, %v507
      %v516 = vcombine.high %v514, %v514
      %v517 = vcombine.high %v309, %v309
      %v519 = vunpack.c.l.s4 1983009808
      %v520 = vunpack.c.0.s8 %v519
      %v521 = vlaneseq
      %v522 = vshrl.u32 %v521, 7
      %v523 = vsub.s32 %v520, %v522
      %v524 = vrot.slane %v309, %v523
      %v526 = vunpack.c.l.s4 1983009808
      %v527 = vunpack.c.0.s8 %v526
      %v528 = vlaneseq
      %v529 = vshrl.u32 %v528, 7
      %v530 = vsub.s32 %v527, %v529
      %v531 = vrot.slane %v517, %v530
      %v532 = vcombine.high %v524, %v524
      %v533 = vcombine.high %v531, %v531
      %v534 = vcombine.high %v310, %v310
      %v536 = vunpack.c.l.s4 1983009808
      %v537 = vunpack.c.0.s8 %v536
      %v538 = vlaneseq
      %v539 = vshrl.u32 %v538, 7
      %v540 = vsub.s32 %v537, %v539
      %v541 = vrot.slane %v310, %v540
      %v543 = vunpack.c.l.s4 1983009808
      %v544 = vunpack.c.0.s8 %v543
      %v545 = vlaneseq
      %v546 = vshrl.u32 %v545, 7
      %v547 = vsub.s32 %v544, %v546
      %v548 = vrot.slane %v534, %v547
      %v549 = vcombine.high %v541, %v541
      %v550 = vcombine.high %v548, %v548
      %v551 = vcombine.high %v311, %v311
      %v553 = vunpack.c.l.s4 1983009808
      %v554 = vunpack.c.0.s8 %v553
      %v555 = vlaneseq
      %v556 = vshrl.u32 %v555, 7
      %v557 = vsub.s32 %v554, %v556
      %v558 = vrot.slane %v311, %v557
      %v560 = vunpack.c.l.s4 1983009808
      %v561 = vunpack.c.0.s8 %v560
      %v562 = vlaneseq
      %v563 = vshrl.u32 %v562, 7
      %v564 = vsub.s32 %v561, %v563
      %v565 = vrot.slane %v551, %v564
      %v566 = vcombine.high %v558, %v558
      %v567 = vcombine.high %v565, %v565
      %v568 = vcombine.high %v312, %v312
      %v570 = vunpack.c.l.s4 1983009808
      %v571 = vunpack.c.0.s8 %v570
      %v572 = vlaneseq
      %v573 = vshrl.u32 %v572, 7
      %v574 = vsub.s32 %v571, %v573
      %v575 = vrot.slane %v312, %v574
      %v577 = vunpack.c.l.s4 1983009808
      %v578 = vunpack.c.0.s8 %v577
      %v579 = vlaneseq
      %v580 = vshrl.u32 %v579, 7
      %v581 = vsub.s32 %v578, %v580
      %v582 = vrot.slane %v568, %v581
      %v583 = vcombine.high %v575, %v575
      %v584 = vcombine.high %v582, %v582
      %v585 = vcombine.high %v313, %v313
      %v587 = vunpack.c.l.s4 1983009808
      %v588 = vunpack.c.0.s8 %v587
      %v589 = vlaneseq
      %v590 = vshrl.u32 %v589, 7
      %v591 = vsub.s32 %v588, %v590
      %v592 = vrot.slane %v313, %v591
      %v594 = vunpack.c.l.s4 1983009808
      %v595 = vunpack.c.0.s8 %v594
      %v596 = vlaneseq
      %v597 = vshrl.u32 %v596, 7
      %v598 = vsub.s32 %v595, %v597
      %v599 = vrot.slane %v585, %v598
      %v600 = vcombine.high %v592, %v592
      %v601 = vcombine.high %v599, %v599
      %v602 = vcombine.high %v314, %v314
      %v604 = vunpack.c.l.s4 1983009808
      %v605 = vunpack.c.0.s8 %v604
      %v606 = vlaneseq
      %v607 = vshrl.u32 %v606, 7
      %v608 = vsub.s32 %v605, %v607
      %v609 = vrot.slane %v314, %v608
      %v611 = vunpack.c.l.s4 1983009808
      %v612 = vunpack.c.0.s8 %v611
      %v613 = vlaneseq
      %v614 = vshrl.u32 %v613, 7
      %v615 = vsub.s32 %v612, %v614
      %v616 = vrot.slane %v602, %v615
      %v617 = vcombine.high %v609, %v609
      %v618 = vcombine.high %v616, %v616
      %v619 = vcombine.high %v315, %v315
      %v621 = vunpack.c.l.s4 1983009808
      %v622 = vunpack.c.0.s8 %v621
      %v623 = vlaneseq
      %v624 = vshrl.u32 %v623, 7
      %v625 = vsub.s32 %v622, %v624
      %v626 = vrot.slane %v315, %v625
      %v628 = vunpack.c.l.s4 1983009808
      %v629 = vunpack.c.0.s8 %v628
      %v630 = vlaneseq
      %v631 = vshrl.u32 %v630, 7
      %v632 = vsub.s32 %v629, %v631
      %v633 = vrot.slane %v619, %v632
      %v634 = vcombine.high %v626, %v626
      %v635 = vcombine.high %v633, %v633
      %v636 = vcombine.high %v316, %v316
      %v638 = vunpack.c.l.s4 1983009808
      %v639 = vunpack.c.0.s8 %v638
      %v640 = vlaneseq
      %v641 = vshrl.u32 %v640, 7
      %v642 = vsub.s32 %v639, %v641
      %v643 = vrot.slane %v316, %v642
      %v645 = vunpack.c.l.s4 1983009808
      %v646 = vunpack.c.0.s8 %v645
      %v647 = vlaneseq
      %v648 = vshrl.u32 %v647, 7
      %v649 = vsub.s32 %v646, %v648
      %v650 = vrot.slane %v636, %v649
      %v651 = vcombine.high %v643, %v643
      %v652 = vcombine.high %v650, %v650
      %v653 = vcombine.high %v333, %v333
      %v655 = vunpack.c.l.s4 1983009808
      %v656 = vunpack.c.0.s8 %v655
      %v657 = vlaneseq
      %v658 = vshrl.u32 %v657, 7
      %v659 = vsub.s32 %v656, %v658
      %v660 = vrot.slane %v333, %v659
      %v662 = vunpack.c.l.s4 1983009808
      %v663 = vunpack.c.0.s8 %v662
      %v664 = vlaneseq
      %v665 = vshrl.u32 %v664, 7
      %v666 = vsub.s32 %v663, %v665
      %v667 = vrot.slane %v653, %v666
      %v668 = vcombine.high %v660, %v660
      %v669 = vcombine.high %v667, %v667
      %v670 = vcombine.high %v334, %v334
      %v672 = vunpack.c.l.s4 1983009808
      %v673 = vunpack.c.0.s8 %v672
      %v674 = vlaneseq
      %v675 = vshrl.u32 %v674, 7
      %v676 = vsub.s32 %v673, %v675
      %v677 = vrot.slane %v334, %v676
      %v679 = vunpack.c.l.s4 1983009808
      %v680 = vunpack.c.0.s8 %v679
      %v681 = vlaneseq
      %v682 = vshrl.u32 %v681, 7
      %v683 = vsub.s32 %v680, %v682
      %v684 = vrot.slane %v670, %v683
      %v685 = vcombine.high %v677, %v677
      %v686 = vcombine.high %v684, %v684
      %v687 = vcombine.high %v335, %v335
      %v689 = vunpack.c.l.s4 1983009808
      %v690 = vunpack.c.0.s8 %v689
      %v691 = vlaneseq
      %v692 = vshrl.u32 %v691, 7
      %v693 = vsub.s32 %v690, %v692
      %v694 = vrot.slane %v335, %v693
      %v696 = vunpack.c.l.s4 1983009808
      %v697 = vunpack.c.0.s8 %v696
      %v698 = vlaneseq
      %v699 = vshrl.u32 %v698, 7
      %v700 = vsub.s32 %v697, %v699
      %v701 = vrot.slane %v687, %v700
      %v702 = vcombine.high %v694, %v694
      %v703 = vcombine.high %v701, %v701
      %v704 = vcombine.high %v336, %v336
      %v706 = vunpack.c.l.s4 1983009808
      %v707 = vunpack.c.0.s8 %v706
      %v708 = vlaneseq
      %v709 = vshrl.u32 %v708, 7
      %v710 = vsub.s32 %v707, %v709
      %v711 = vrot.slane %v336, %v710
      %v713 = vunpack.c.l.s4 1983009808
      %v714 = vunpack.c.0.s8 %v713
      %v715 = vlaneseq
      %v716 = vshrl.u32 %v715, 7
      %v717 = vsub.s32 %v714, %v716
      %v718 = vrot.slane %v704, %v717
      %v719 = vcombine.high %v711, %v711
      %v720 = vcombine.high %v718, %v718
      %v721 = vcombine.high %v337, %v337
      %v723 = vunpack.c.l.s4 1983009808
      %v724 = vunpack.c.0.s8 %v723
      %v725 = vlaneseq
      %v726 = vshrl.u32 %v725, 7
      %v727 = vsub.s32 %v724, %v726
      %v728 = vrot.slane %v337, %v727
      %v730 = vunpack.c.l.s4 1983009808
      %v731 = vunpack.c.0.s8 %v730
      %v732 = vlaneseq
      %v733 = vshrl.u32 %v732, 7
      %v734 = vsub.s32 %v731, %v733
      %v735 = vrot.slane %v721, %v734
      %v736 = vcombine.high %v728, %v728
      %v737 = vcombine.high %v735, %v735
      %v738 = vcombine.high %v338, %v338
      %v740 = vunpack.c.l.s4 1983009808
      %v741 = vunpack.c.0.s8 %v740
      %v742 = vlaneseq
      %v743 = vshrl.u32 %v742, 7
      %v744 = vsub.s32 %v741, %v743
      %v745 = vrot.slane %v338, %v744
      %v747 = vunpack.c.l.s4 1983009808
      %v748 = vunpack.c.0.s8 %v747
      %v749 = vlaneseq
      %v750 = vshrl.u32 %v749, 7
      %v751 = vsub.s32 %v748, %v750
      %v752 = vrot.slane %v738, %v751
      %v753 = vcombine.high %v745, %v745
      %v754 = vcombine.high %v752, %v752
      %v755 = vcombine.high %v339, %v339
      %v757 = vunpack.c.l.s4 1983009808
      %v758 = vunpack.c.0.s8 %v757
      %v759 = vlaneseq
      %v760 = vshrl.u32 %v759, 7
      %v761 = vsub.s32 %v758, %v760
      %v762 = vrot.slane %v339, %v761
      %v764 = vunpack.c.l.s4 1983009808
      %v765 = vunpack.c.0.s8 %v764
      %v766 = vlaneseq
      %v767 = vshrl.u32 %v766, 7
      %v768 = vsub.s32 %v765, %v767
      %v769 = vrot.slane %v755, %v768
      %v770 = vcombine.high %v762, %v762
      %v771 = vcombine.high %v769, %v769
      %v772 = vcombine.high %v340, %v340
      %v774 = vunpack.c.l.s4 1983009808
      %v775 = vunpack.c.0.s8 %v774
      %v776 = vlaneseq
      %v777 = vshrl.u32 %v776, 7
      %v778 = vsub.s32 %v775, %v777
      %v779 = vrot.slane %v340, %v778
      %v781 = vunpack.c.l.s4 1983009808
      %v782 = vunpack.c.0.s8 %v781
      %v783 = vlaneseq
      %v784 = vshrl.u32 %v783, 7
      %v785 = vsub.s32 %v782, %v784
      %v786 = vrot.slane %v772, %v785
      %v787 = vcombine.high %v779, %v779
      %v788 = vcombine.high %v786, %v786
      %v789 = vcombine.high %v341, %v341
      %v791 = vunpack.c.l.s4 1983009808
      %v792 = vunpack.c.0.s8 %v791
      %v793 = vlaneseq
      %v794 = vshrl.u32 %v793, 7
      %v795 = vsub.s32 %v792, %v794
      %v796 = vrot.slane %v341, %v795
      %v798 = vunpack.c.l.s4 1983009808
      %v799 = vunpack.c.0.s8 %v798
      %v800 = vlaneseq
      %v801 = vshrl.u32 %v800, 7
      %v802 = vsub.s32 %v799, %v801
      %v803 = vrot.slane %v789, %v802
      %v804 = vcombine.high %v796, %v796
      %v805 = vcombine.high %v803, %v803
      %v806 = vcombine.high %v342, %v342
      %v808 = vunpack.c.l.s4 1983009808
      %v809 = vunpack.c.0.s8 %v808
      %v810 = vlaneseq
      %v811 = vshrl.u32 %v810, 7
      %v812 = vsub.s32 %v809, %v811
      %v813 = vrot.slane %v342, %v812
      %v815 = vunpack.c.l.s4 1983009808
      %v816 = vunpack.c.0.s8 %v815
      %v817 = vlaneseq
      %v818 = vshrl.u32 %v817, 7
      %v819 = vsub.s32 %v816, %v818
      %v820 = vrot.slane %v806, %v819
      %v821 = vcombine.high %v813, %v813
      %v822 = vcombine.high %v820, %v820
      %v823 = vcombine.high %v343, %v343
      %v825 = vunpack.c.l.s4 1983009808
      %v826 = vunpack.c.0.s8 %v825
      %v827 = vlaneseq
      %v828 = vshrl.u32 %v827, 7
      %v829 = vsub.s32 %v826, %v828
      %v830 = vrot.slane %v343, %v829
      %v832 = vunpack.c.l.s4 1983009808
      %v833 = vunpack.c.0.s8 %v832
      %v834 = vlaneseq
      %v835 = vshrl.u32 %v834, 7
      %v836 = vsub.s32 %v833, %v835
      %v837 = vrot.slane %v823, %v836
      %v838 = vcombine.high %v830, %v830
      %v839 = vcombine.high %v837, %v837
      %v840 = vcombine.high %v344, %v344
      %v842 = vunpack.c.l.s4 1983009808
      %v843 = vunpack.c.0.s8 %v842
      %v844 = vlaneseq
      %v845 = vshrl.u32 %v844, 7
      %v846 = vsub.s32 %v843, %v845
      %v847 = vrot.slane %v344, %v846
      %v849 = vunpack.c.l.s4 1983009808
      %v850 = vunpack.c.0.s8 %v849
      %v851 = vlaneseq
      %v852 = vshrl.u32 %v851, 7
      %v853 = vsub.s32 %v850, %v852
      %v854 = vrot.slane %v840, %v853
      %v855 = vcombine.high %v847, %v847
      %v856 = vcombine.high %v854, %v854
      %v857 = vcombine.high %v345, %v345
      %v859 = vunpack.c.l.s4 1983009808
      %v860 = vunpack.c.0.s8 %v859
      %v861 = vlaneseq
      %v862 = vshrl.u32 %v861, 7
      %v863 = vsub.s32 %v860, %v862
      %v864 = vrot.slane %v345, %v863
      %v866 = vunpack.c.l.s4 1983009808
      %v867 = vunpack.c.0.s8 %v866
      %v868 = vlaneseq
      %v869 = vshrl.u32 %v868, 7
      %v870 = vsub.s32 %v867, %v869
      %v871 = vrot.slane %v857, %v870
      %v872 = vcombine.high %v864, %v864
      %v873 = vcombine.high %v871, %v871
      %v874 = vcombine.high %v346, %v346
      %v876 = vunpack.c.l.s4 1983009808
      %v877 = vunpack.c.0.s8 %v876
      %v878 = vlaneseq
      %v879 = vshrl.u32 %v878, 7
      %v880 = vsub.s32 %v877, %v879
      %v881 = vrot.slane %v346, %v880
      %v883 = vunpack.c.l.s4 1983009808
      %v884 = vunpack.c.0.s8 %v883
      %v885 = vlaneseq
      %v886 = vshrl.u32 %v885, 7
      %v887 = vsub.s32 %v884, %v886
      %v888 = vrot.slane %v874, %v887
      %v889 = vcombine.high %v881, %v881
      %v890 = vcombine.high %v888, %v888
      %v891 = vcombine.high %v347, %v347
      %v893 = vunpack.c.l.s4 1983009808
      %v894 = vunpack.c.0.s8 %v893
      %v895 = vlaneseq
      %v896 = vshrl.u32 %v895, 7
      %v897 = vsub.s32 %v894, %v896
      %v898 = vrot.slane %v347, %v897
      %v900 = vunpack.c.l.s4 1983009808
      %v901 = vunpack.c.0.s8 %v900
      %v902 = vlaneseq
      %v903 = vshrl.u32 %v902, 7
      %v904 = vsub.s32 %v901, %v903
      %v905 = vrot.slane %v891, %v904
      %v906 = vcombine.high %v898, %v898
      %v907 = vcombine.high %v905, %v905
      %v908 = vcombine.high %v348, %v348
      %v910 = vunpack.c.l.s4 1983009808
      %v911 = vunpack.c.0.s8 %v910
      %v912 = vlaneseq
      %v913 = vshrl.u32 %v912, 7
      %v914 = vsub.s32 %v911, %v913
      %v915 = vrot.slane %v348, %v914
      %v917 = vunpack.c.l.s4 1983009808
      %v918 = vunpack.c.0.s8 %v917
      %v919 = vlaneseq
      %v920 = vshrl.u32 %v919, 7
      %v921 = vsub.s32 %v918, %v920
      %v922 = vrot.slane %v908, %v921
      %v923 = vcombine.high %v915, %v915
      %v924 = vcombine.high %v922, %v922
      %vm1053 = vcmask 25600
      %v1054 = vsel %vm1053, %v388, -inf
      %v1055 = vrot.slane %v1054, 4
      %v1056 = vmax.f32 %v1054, %v1055
      %v1057 = vrot.slane %v1056, 2
      %v1058 = vmax.f32 %v1056, %v1057
      %v1059 = vrot.slane %v1058, 1
      %v1060 = vmax.f32 %v1058, %v1059
      %v1061 = vsel %vm1053, %v396, -inf
      %v1062 = vrot.slane %v1061, 4
      %v1063 = vmax.f32 %v1061, %v1062
      %v1064 = vrot.slane %v1063, 2
      %v1065 = vmax.f32 %v1063, %v1064
      %v1066 = vrot.slane %v1065, 1
      %v1067 = vmax.f32 %v1065, %v1066
      %v1068 = vsel %vm1053, %v395, -inf
      %v1069 = vrot.slane %v1068, 4
      %v1070 = vmax.f32 %v1068, %v1069
      %v1071 = vrot.slane %v1070, 2
      %v1072 = vmax.f32 %v1070, %v1071
      %v1073 = vrot.slane %v1072, 1
      %v1074 = vmax.f32 %v1072, %v1073
      %v1075 = vsel %vm1053, %v397, -inf
      %v1076 = vrot.slane %v1075, 4
      %v1077 = vmax.f32 %v1075, %v1076
      %v1078 = vrot.slane %v1077, 2
      %v1079 = vmax.f32 %v1077, %v1078
      %v1080 = vrot.slane %v1079, 1
      %v1081 = vmax.f32 %v1079, %v1080
      %v1082 = vsel %vm1053, %v405, -inf
      %v1083 = vrot.slane %v1082, 4
      %v1084 = vmax.f32 %v1082, %v1083
      %v1085 = vrot.slane %v1084, 2
      %v1086 = vmax.f32 %v1084, %v1085
      %v1087 = vrot.slane %v1086, 1
      %v1088 = vmax.f32 %v1086, %v1087
      %v1089 = vsel %vm1053, %v413, -inf
      %v1090 = vrot.slane %v1089, 4
      %v1091 = vmax.f32 %v1089, %v1090
      %v1092 = vrot.slane %v1091, 2
      %v1093 = vmax.f32 %v1091, %v1092
      %v1094 = vrot.slane %v1093, 1
      %v1095 = vmax.f32 %v1093, %v1094
      %v1096 = vsel %vm1053, %v412, -inf
      %v1097 = vrot.slane %v1096, 4
      %v1098 = vmax.f32 %v1096, %v1097
      %v1099 = vrot.slane %v1098, 2
      %v1100 = vmax.f32 %v1098, %v1099
      %v1101 = vrot.slane %v1100, 1
      %v1102 = vmax.f32 %v1100, %v1101
      %v1103 = vsel %vm1053, %v414, -inf
      %v1104 = vrot.slane %v1103, 4
      %v1105 = vmax.f32 %v1103, %v1104
      %v1106 = vrot.slane %v1105, 2
      %v1107 = vmax.f32 %v1105, %v1106
      %v1108 = vrot.slane %v1107, 1
      %v1109 = vmax.f32 %v1107, %v1108
      %v1110 = vsel %vm1053, %v422, -inf
      %v1111 = vrot.slane %v1110, 4
      %v1112 = vmax.f32 %v1110, %v1111
      %v1113 = vrot.slane %v1112, 2
      %v1114 = vmax.f32 %v1112, %v1113
      %v1115 = vrot.slane %v1114, 1
      %v1116 = vmax.f32 %v1114, %v1115
      %v1117 = vsel %vm1053, %v430, -inf
      %v1118 = vrot.slane %v1117, 4
      %v1119 = vmax.f32 %v1117, %v1118
      %v1120 = vrot.slane %v1119, 2
      %v1121 = vmax.f32 %v1119, %v1120
      %v1122 = vrot.slane %v1121, 1
      %v1123 = vmax.f32 %v1121, %v1122
      %v1124 = vsel %vm1053, %v429, -inf
      %v1125 = vrot.slane %v1124, 4
      %v1126 = vmax.f32 %v1124, %v1125
      %v1127 = vrot.slane %v1126, 2
      %v1128 = vmax.f32 %v1126, %v1127
      %v1129 = vrot.slane %v1128, 1
      %v1130 = vmax.f32 %v1128, %v1129
      %v1131 = vsel %vm1053, %v431, -inf
      %v1132 = vrot.slane %v1131, 4
      %v1133 = vmax.f32 %v1131, %v1132
      %v1134 = vrot.slane %v1133, 2
      %v1135 = vmax.f32 %v1133, %v1134
      %v1136 = vrot.slane %v1135, 1
      %v1137 = vmax.f32 %v1135, %v1136
      %v1138 = vsel %vm1053, %v439, -inf
      %v1139 = vrot.slane %v1138, 4
      %v1140 = vmax.f32 %v1138, %v1139
      %v1141 = vrot.slane %v1140, 2
      %v1142 = vmax.f32 %v1140, %v1141
      %v1143 = vrot.slane %v1142, 1
      %v1144 = vmax.f32 %v1142, %v1143
      %v1145 = vsel %vm1053, %v447, -inf
      %v1146 = vrot.slane %v1145, 4
      %v1147 = vmax.f32 %v1145, %v1146
      %v1148 = vrot.slane %v1147, 2
      %v1149 = vmax.f32 %v1147, %v1148
      %v1150 = vrot.slane %v1149, 1
      %v1151 = vmax.f32 %v1149, %v1150
      %v1152 = vsel %vm1053, %v446, -inf
      %v1153 = vrot.slane %v1152, 4
      %v1154 = vmax.f32 %v1152, %v1153
      %v1155 = vrot.slane %v1154, 2
      %v1156 = vmax.f32 %v1154, %v1155
      %v1157 = vrot.slane %v1156, 1
      %v1158 = vmax.f32 %v1156, %v1157
      %v1159 = vsel %vm1053, %v448, -inf
      %v1160 = vrot.slane %v1159, 4
      %v1161 = vmax.f32 %v1159, %v1160
      %v1162 = vrot.slane %v1161, 2
      %v1163 = vmax.f32 %v1161, %v1162
      %v1164 = vrot.slane %v1163, 1
      %v1165 = vmax.f32 %v1163, %v1164
      %v1166 = vsel %vm1053, %v456, -inf
      %v1167 = vrot.slane %v1166, 4
      %v1168 = vmax.f32 %v1166, %v1167
      %v1169 = vrot.slane %v1168, 2
      %v1170 = vmax.f32 %v1168, %v1169
      %v1171 = vrot.slane %v1170, 1
      %v1172 = vmax.f32 %v1170, %v1171
      %v1173 = vsel %vm1053, %v464, -inf
      %v1174 = vrot.slane %v1173, 4
      %v1175 = vmax.f32 %v1173, %v1174
      %v1176 = vrot.slane %v1175, 2
      %v1177 = vmax.f32 %v1175, %v1176
      %v1178 = vrot.slane %v1177, 1
      %v1179 = vmax.f32 %v1177, %v1178
      %v1180 = vsel %vm1053, %v463, -inf
      %v1181 = vrot.slane %v1180, 4
      %v1182 = vmax.f32 %v1180, %v1181
      %v1183 = vrot.slane %v1182, 2
      %v1184 = vmax.f32 %v1182, %v1183
      %v1185 = vrot.slane %v1184, 1
      %v1186 = vmax.f32 %v1184, %v1185
      %v1187 = vsel %vm1053, %v465, -inf
      %v1188 = vrot.slane %v1187, 4
      %v1189 = vmax.f32 %v1187, %v1188
      %v1190 = vrot.slane %v1189, 2
      %v1191 = vmax.f32 %v1189, %v1190
      %v1192 = vrot.slane %v1191, 1
      %v1193 = vmax.f32 %v1191, %v1192
      %v1194 = vsel %vm1053, %v473, -inf
      %v1195 = vrot.slane %v1194, 4
      %v1196 = vmax.f32 %v1194, %v1195
      %v1197 = vrot.slane %v1196, 2
      %v1198 = vmax.f32 %v1196, %v1197
      %v1199 = vrot.slane %v1198, 1
      %v1200 = vmax.f32 %v1198, %v1199
      %v1201 = vsel %vm1053, %v481, -inf
      %v1202 = vrot.slane %v1201, 4
      %v1203 = vmax.f32 %v1201, %v1202
      %v1204 = vrot.slane %v1203, 2
      %v1205 = vmax.f32 %v1203, %v1204
      %v1206 = vrot.slane %v1205, 1
      %v1207 = vmax.f32 %v1205, %v1206
      %v1208 = vsel %vm1053, %v480, -inf
      %v1209 = vrot.slane %v1208, 4
      %v1210 = vmax.f32 %v1208, %v1209
      %v1211 = vrot.slane %v1210, 2
      %v1212 = vmax.f32 %v1210, %v1211
      %v1213 = vrot.slane %v1212, 1
      %v1214 = vmax.f32 %v1212, %v1213
      %v1215 = vsel %vm1053, %v482, -inf
      %v1216 = vrot.slane %v1215, 4
      %v1217 = vmax.f32 %v1215, %v1216
      %v1218 = vrot.slane %v1217, 2
      %v1219 = vmax.f32 %v1217, %v1218
      %v1220 = vrot.slane %v1219, 1
      %v1221 = vmax.f32 %v1219, %v1220
      %v1222 = vsel %vm1053, %v490, -inf
      %v1223 = vrot.slane %v1222, 4
      %v1224 = vmax.f32 %v1222, %v1223
      %v1225 = vrot.slane %v1224, 2
      %v1226 = vmax.f32 %v1224, %v1225
      %v1227 = vrot.slane %v1226, 1
      %v1228 = vmax.f32 %v1226, %v1227
      %v1229 = vsel %vm1053, %v498, -inf
      %v1230 = vrot.slane %v1229, 4
      %v1231 = vmax.f32 %v1229, %v1230
      %v1232 = vrot.slane %v1231, 2
      %v1233 = vmax.f32 %v1231, %v1232
      %v1234 = vrot.slane %v1233, 1
      %v1235 = vmax.f32 %v1233, %v1234
      %v1236 = vsel %vm1053, %v497, -inf
      %v1237 = vrot.slane %v1236, 4
      %v1238 = vmax.f32 %v1236, %v1237
      %v1239 = vrot.slane %v1238, 2
      %v1240 = vmax.f32 %v1238, %v1239
      %v1241 = vrot.slane %v1240, 1
      %v1242 = vmax.f32 %v1240, %v1241
      %v1243 = vsel %vm1053, %v499, -inf
      %v1244 = vrot.slane %v1243, 4
      %v1245 = vmax.f32 %v1243, %v1244
      %v1246 = vrot.slane %v1245, 2
      %v1247 = vmax.f32 %v1245, %v1246
      %v1248 = vrot.slane %v1247, 1
      %v1249 = vmax.f32 %v1247, %v1248
      %v1250 = vsel %vm1053, %v507, -inf
      %v1251 = vrot.slane %v1250, 4
      %v1252 = vmax.f32 %v1250, %v1251
      %v1253 = vrot.slane %v1252, 2
      %v1254 = vmax.f32 %v1252, %v1253
      %v1255 = vrot.slane %v1254, 1
      %v1256 = vmax.f32 %v1254, %v1255
      %v1257 = vsel %vm1053, %v515, -inf
      %v1258 = vrot.slane %v1257, 4
      %v1259 = vmax.f32 %v1257, %v1258
      %v1260 = vrot.slane %v1259, 2
      %v1261 = vmax.f32 %v1259, %v1260
      %v1262 = vrot.slane %v1261, 1
      %v1263 = vmax.f32 %v1261, %v1262
      %v1264 = vsel %vm1053, %v514, -inf
      %v1265 = vrot.slane %v1264, 4
      %v1266 = vmax.f32 %v1264, %v1265
      %v1267 = vrot.slane %v1266, 2
      %v1268 = vmax.f32 %v1266, %v1267
      %v1269 = vrot.slane %v1268, 1
      %v1270 = vmax.f32 %v1268, %v1269
      %v1271 = vsel %vm1053, %v516, -inf
      %v1272 = vrot.slane %v1271, 4
      %v1273 = vmax.f32 %v1271, %v1272
      %v1274 = vrot.slane %v1273, 2
      %v1275 = vmax.f32 %v1273, %v1274
      %v1276 = vrot.slane %v1275, 1
      %v1277 = vmax.f32 %v1275, %v1276
      %v1278 = vsel %vm1053, %v524, -inf
      %v1279 = vrot.slane %v1278, 4
      %v1280 = vmax.f32 %v1278, %v1279
      %v1281 = vrot.slane %v1280, 2
      %v1282 = vmax.f32 %v1280, %v1281
      %v1283 = vrot.slane %v1282, 1
      %v1284 = vmax.f32 %v1282, %v1283
      %v1285 = vsel %vm1053, %v532, -inf
      %v1286 = vrot.slane %v1285, 4
      %v1287 = vmax.f32 %v1285, %v1286
      %v1288 = vrot.slane %v1287, 2
      %v1289 = vmax.f32 %v1287, %v1288
      %v1290 = vrot.slane %v1289, 1
      %v1291 = vmax.f32 %v1289, %v1290
      %v1292 = vsel %vm1053, %v531, -inf
      %v1293 = vrot.slane %v1292, 4
      %v1294 = vmax.f32 %v1292, %v1293
      %v1295 = vrot.slane %v1294, 2
      %v1296 = vmax.f32 %v1294, %v1295
      %v1297 = vrot.slane %v1296, 1
      %v1298 = vmax.f32 %v1296, %v1297
      %v1299 = vsel %vm1053, %v533, -inf
      %v1300 = vrot.slane %v1299, 4
      %v1301 = vmax.f32 %v1299, %v1300
      %v1302 = vrot.slane %v1301, 2
      %v1303 = vmax.f32 %v1301, %v1302
      %v1304 = vrot.slane %v1303, 1
      %v1305 = vmax.f32 %v1303, %v1304
      %v1306 = vsel %vm1053, %v541, -inf
      %v1307 = vrot.slane %v1306, 4
      %v1308 = vmax.f32 %v1306, %v1307
      %v1309 = vrot.slane %v1308, 2
      %v1310 = vmax.f32 %v1308, %v1309
      %v1311 = vrot.slane %v1310, 1
      %v1312 = vmax.f32 %v1310, %v1311
      %v1313 = vsel %vm1053, %v549, -inf
      %v1314 = vrot.slane %v1313, 4
      %v1315 = vmax.f32 %v1313, %v1314
      %v1316 = vrot.slane %v1315, 2
      %v1317 = vmax.f32 %v1315, %v1316
      %v1318 = vrot.slane %v1317, 1
      %v1319 = vmax.f32 %v1317, %v1318
      %v1320 = vsel %vm1053, %v548, -inf
      %v1321 = vrot.slane %v1320, 4
      %v1322 = vmax.f32 %v1320, %v1321
      %v1323 = vrot.slane %v1322, 2
      %v1324 = vmax.f32 %v1322, %v1323
      %v1325 = vrot.slane %v1324, 1
      %v1326 = vmax.f32 %v1324, %v1325
      %v1327 = vsel %vm1053, %v550, -inf
      %v1328 = vrot.slane %v1327, 4
      %v1329 = vmax.f32 %v1327, %v1328
      %v1330 = vrot.slane %v1329, 2
      %v1331 = vmax.f32 %v1329, %v1330
      %v1332 = vrot.slane %v1331, 1
      %v1333 = vmax.f32 %v1331, %v1332
      %v1334 = vsel %vm1053, %v558, -inf
      %v1335 = vrot.slane %v1334, 4
      %v1336 = vmax.f32 %v1334, %v1335
      %v1337 = vrot.slane %v1336, 2
      %v1338 = vmax.f32 %v1336, %v1337
      %v1339 = vrot.slane %v1338, 1
      %v1340 = vmax.f32 %v1338, %v1339
      %v1341 = vsel %vm1053, %v566, -inf
      %v1342 = vrot.slane %v1341, 4
      %v1343 = vmax.f32 %v1341, %v1342
      %v1344 = vrot.slane %v1343, 2
      %v1345 = vmax.f32 %v1343, %v1344
      %v1346 = vrot.slane %v1345, 1
      %v1347 = vmax.f32 %v1345, %v1346
      %v1348 = vsel %vm1053, %v565, -inf
      %v1349 = vrot.slane %v1348, 4
      %v1350 = vmax.f32 %v1348, %v1349
      %v1351 = vrot.slane %v1350, 2
      %v1352 = vmax.f32 %v1350, %v1351
      %v1353 = vrot.slane %v1352, 1
      %v1354 = vmax.f32 %v1352, %v1353
      %v1355 = vsel %vm1053, %v567, -inf
      %v1356 = vrot.slane %v1355, 4
      %v1357 = vmax.f32 %v1355, %v1356
      %v1358 = vrot.slane %v1357, 2
      %v1359 = vmax.f32 %v1357, %v1358
      %v1360 = vrot.slane %v1359, 1
      %v1361 = vmax.f32 %v1359, %v1360
      %v1362 = vsel %vm1053, %v575, -inf
      %v1363 = vrot.slane %v1362, 4
      %v1364 = vmax.f32 %v1362, %v1363
      %v1365 = vrot.slane %v1364, 2
      %v1366 = vmax.f32 %v1364, %v1365
      %v1367 = vrot.slane %v1366, 1
      %v1368 = vmax.f32 %v1366, %v1367
      %v1369 = vsel %vm1053, %v583, -inf
      %v1370 = vrot.slane %v1369, 4
      %v1371 = vmax.f32 %v1369, %v1370
      %v1372 = vrot.slane %v1371, 2
      %v1373 = vmax.f32 %v1371, %v1372
      %v1374 = vrot.slane %v1373, 1
      %v1375 = vmax.f32 %v1373, %v1374
      %v1376 = vsel %vm1053, %v582, -inf
      %v1377 = vrot.slane %v1376, 4
      %v1378 = vmax.f32 %v1376, %v1377
      %v1379 = vrot.slane %v1378, 2
      %v1380 = vmax.f32 %v1378, %v1379
      %v1381 = vrot.slane %v1380, 1
      %v1382 = vmax.f32 %v1380, %v1381
      %v1383 = vsel %vm1053, %v584, -inf
      %v1384 = vrot.slane %v1383, 4
      %v1385 = vmax.f32 %v1383, %v1384
      %v1386 = vrot.slane %v1385, 2
      %v1387 = vmax.f32 %v1385, %v1386
      %v1388 = vrot.slane %v1387, 1
      %v1389 = vmax.f32 %v1387, %v1388
      %v1390 = vsel %vm1053, %v592, -inf
      %v1391 = vrot.slane %v1390, 4
      %v1392 = vmax.f32 %v1390, %v1391
      %v1393 = vrot.slane %v1392, 2
      %v1394 = vmax.f32 %v1392, %v1393
      %v1395 = vrot.slane %v1394, 1
      %v1396 = vmax.f32 %v1394, %v1395
      %v1397 = vsel %vm1053, %v600, -inf
      %v1398 = vrot.slane %v1397, 4
      %v1399 = vmax.f32 %v1397, %v1398
      %v1400 = vrot.slane %v1399, 2
      %v1401 = vmax.f32 %v1399, %v1400
      %v1402 = vrot.slane %v1401, 1
      %v1403 = vmax.f32 %v1401, %v1402
      %v1404 = vsel %vm1053, %v599, -inf
      %v1405 = vrot.slane %v1404, 4
      %v1406 = vmax.f32 %v1404, %v1405
      %v1407 = vrot.slane %v1406, 2
      %v1408 = vmax.f32 %v1406, %v1407
      %v1409 = vrot.slane %v1408, 1
      %v1410 = vmax.f32 %v1408, %v1409
      %v1411 = vsel %vm1053, %v601, -inf
      %v1412 = vrot.slane %v1411, 4
      %v1413 = vmax.f32 %v1411, %v1412
      %v1414 = vrot.slane %v1413, 2
      %v1415 = vmax.f32 %v1413, %v1414
      %v1416 = vrot.slane %v1415, 1
      %v1417 = vmax.f32 %v1415, %v1416
      %v1418 = vsel %vm1053, %v609, -inf
      %v1419 = vrot.slane %v1418, 4
      %v1420 = vmax.f32 %v1418, %v1419
      %v1421 = vrot.slane %v1420, 2
      %v1422 = vmax.f32 %v1420, %v1421
      %v1423 = vrot.slane %v1422, 1
      %v1424 = vmax.f32 %v1422, %v1423
      %v1425 = vsel %vm1053, %v617, -inf
      %v1426 = vrot.slane %v1425, 4
      %v1427 = vmax.f32 %v1425, %v1426
      %v1428 = vrot.slane %v1427, 2
      %v1429 = vmax.f32 %v1427, %v1428
      %v1430 = vrot.slane %v1429, 1
      %v1431 = vmax.f32 %v1429, %v1430
      %v1432 = vsel %vm1053, %v616, -inf
      %v1433 = vrot.slane %v1432, 4
      %v1434 = vmax.f32 %v1432, %v1433
      %v1435 = vrot.slane %v1434, 2
      %v1436 = vmax.f32 %v1434, %v1435
      %v1437 = vrot.slane %v1436, 1
      %v1438 = vmax.f32 %v1436, %v1437
      %v1439 = vsel %vm1053, %v618, -inf
      %v1440 = vrot.slane %v1439, 4
      %v1441 = vmax.f32 %v1439, %v1440
      %v1442 = vrot.slane %v1441, 2
      %v1443 = vmax.f32 %v1441, %v1442
      %v1444 = vrot.slane %v1443, 1
      %v1445 = vmax.f32 %v1443, %v1444
      %v1446 = vsel %vm1053, %v626, -inf
      %v1447 = vrot.slane %v1446, 4
      %v1448 = vmax.f32 %v1446, %v1447
      %v1449 = vrot.slane %v1448, 2
      %v1450 = vmax.f32 %v1448, %v1449
      %v1451 = vrot.slane %v1450, 1
      %v1452 = vmax.f32 %v1450, %v1451
      %v1453 = vsel %vm1053, %v634, -inf
      %v1454 = vrot.slane %v1453, 4
      %v1455 = vmax.f32 %v1453, %v1454
      %v1456 = vrot.slane %v1455, 2
      %v1457 = vmax.f32 %v1455, %v1456
      %v1458 = vrot.slane %v1457, 1
      %v1459 = vmax.f32 %v1457, %v1458
      %v1460 = vsel %vm1053, %v633, -inf
      %v1461 = vrot.slane %v1460, 4
      %v1462 = vmax.f32 %v1460, %v1461
      %v1463 = vrot.slane %v1462, 2
      %v1464 = vmax.f32 %v1462, %v1463
      %v1465 = vrot.slane %v1464, 1
      %v1466 = vmax.f32 %v1464, %v1465
      %v1467 = vsel %vm1053, %v635, -inf
      %v1468 = vrot.slane %v1467, 4
      %v1469 = vmax.f32 %v1467, %v1468
      %v1470 = vrot.slane %v1469, 2
      %v1471 = vmax.f32 %v1469, %v1470
      %v1472 = vrot.slane %v1471, 1
      %v1473 = vmax.f32 %v1471, %v1472
      %v1474 = vsel %vm1053, %v643, -inf
      %v1475 = vrot.slane %v1474, 4
      %v1476 = vmax.f32 %v1474, %v1475
      %v1477 = vrot.slane %v1476, 2
      %v1478 = vmax.f32 %v1476, %v1477
      %v1479 = vrot.slane %v1478, 1
      %v1480 = vmax.f32 %v1478, %v1479
      %v1481 = vsel %vm1053, %v651, -inf
      %v1482 = vrot.slane %v1481, 4
      %v1483 = vmax.f32 %v1481, %v1482
      %v1484 = vrot.slane %v1483, 2
      %v1485 = vmax.f32 %v1483, %v1484
      %v1486 = vrot.slane %v1485, 1
      %v1487 = vmax.f32 %v1485, %v1486
      %v1488 = vsel %vm1053, %v650, -inf
      %v1489 = vrot.slane %v1488, 4
      %v1490 = vmax.f32 %v1488, %v1489
      %v1491 = vrot.slane %v1490, 2
      %v1492 = vmax.f32 %v1490, %v1491
      %v1493 = vrot.slane %v1492, 1
      %v1494 = vmax.f32 %v1492, %v1493
      %v1495 = vsel %vm1053, %v652, -inf
      %v1496 = vrot.slane %v1495, 4
      %v1497 = vmax.f32 %v1495, %v1496
      %v1498 = vrot.slane %v1497, 2
      %v1499 = vmax.f32 %v1497, %v1498
      %v1500 = vrot.slane %v1499, 1
      %v1501 = vmax.f32 %v1499, %v1500
      %v1502 = vsel %vm1053, %v660, -inf
      %v1503 = vrot.slane %v1502, 4
      %v1504 = vmax.f32 %v1502, %v1503
      %v1505 = vrot.slane %v1504, 2
      %v1506 = vmax.f32 %v1504, %v1505
      %v1507 = vrot.slane %v1506, 1
      %v1508 = vmax.f32 %v1506, %v1507
      %v1509 = vsel %vm1053, %v668, -inf
      %v1510 = vrot.slane %v1509, 4
      %v1511 = vmax.f32 %v1509, %v1510
      %v1512 = vrot.slane %v1511, 2
      %v1513 = vmax.f32 %v1511, %v1512
      %v1514 = vrot.slane %v1513, 1
      %v1515 = vmax.f32 %v1513, %v1514
      %v1516 = vsel %vm1053, %v667, -inf
      %v1517 = vrot.slane %v1516, 4
      %v1518 = vmax.f32 %v1516, %v1517
      %v1519 = vrot.slane %v1518, 2
      %v1520 = vmax.f32 %v1518, %v1519
      %v1521 = vrot.slane %v1520, 1
      %v1522 = vmax.f32 %v1520, %v1521
      %v1523 = vsel %vm1053, %v669, -inf
      %v1524 = vrot.slane %v1523, 4
      %v1525 = vmax.f32 %v1523, %v1524
      %v1526 = vrot.slane %v1525, 2
      %v1527 = vmax.f32 %v1525, %v1526
      %v1528 = vrot.slane %v1527, 1
      %v1529 = vmax.f32 %v1527, %v1528
      %v1530 = vsel %vm1053, %v677, -inf
      %v1531 = vrot.slane %v1530, 4
      %v1532 = vmax.f32 %v1530, %v1531
      %v1533 = vrot.slane %v1532, 2
      %v1534 = vmax.f32 %v1532, %v1533
      %v1535 = vrot.slane %v1534, 1
      %v1536 = vmax.f32 %v1534, %v1535
      %v1537 = vsel %vm1053, %v685, -inf
      %v1538 = vrot.slane %v1537, 4
      %v1539 = vmax.f32 %v1537, %v1538
      %v1540 = vrot.slane %v1539, 2
      %v1541 = vmax.f32 %v1539, %v1540
      %v1542 = vrot.slane %v1541, 1
      %v1543 = vmax.f32 %v1541, %v1542
      %v1544 = vsel %vm1053, %v684, -inf
      %v1545 = vrot.slane %v1544, 4
      %v1546 = vmax.f32 %v1544, %v1545
      %v1547 = vrot.slane %v1546, 2
      %v1548 = vmax.f32 %v1546, %v1547
      %v1549 = vrot.slane %v1548, 1
      %v1550 = vmax.f32 %v1548, %v1549
      %v1551 = vsel %vm1053, %v686, -inf
      %v1552 = vrot.slane %v1551, 4
      %v1553 = vmax.f32 %v1551, %v1552
      %v1554 = vrot.slane %v1553, 2
      %v1555 = vmax.f32 %v1553, %v1554
      %v1556 = vrot.slane %v1555, 1
      %v1557 = vmax.f32 %v1555, %v1556
      %v1558 = vsel %vm1053, %v694, -inf
      %v1559 = vrot.slane %v1558, 4
      %v1560 = vmax.f32 %v1558, %v1559
      %v1561 = vrot.slane %v1560, 2
      %v1562 = vmax.f32 %v1560, %v1561
      %v1563 = vrot.slane %v1562, 1
      %v1564 = vmax.f32 %v1562, %v1563
      %v1565 = vsel %vm1053, %v702, -inf
      %v1566 = vrot.slane %v1565, 4
      %v1567 = vmax.f32 %v1565, %v1566
      %v1568 = vrot.slane %v1567, 2
      %v1569 = vmax.f32 %v1567, %v1568
      %v1570 = vrot.slane %v1569, 1
      %v1571 = vmax.f32 %v1569, %v1570
      %v1572 = vsel %vm1053, %v701, -inf
      %v1573 = vrot.slane %v1572, 4
      %v1574 = vmax.f32 %v1572, %v1573
      %v1575 = vrot.slane %v1574, 2
      %v1576 = vmax.f32 %v1574, %v1575
      %v1577 = vrot.slane %v1576, 1
      %v1578 = vmax.f32 %v1576, %v1577
      %v1579 = vsel %vm1053, %v703, -inf
      %v1580 = vrot.slane %v1579, 4
      %v1581 = vmax.f32 %v1579, %v1580
      %v1582 = vrot.slane %v1581, 2
      %v1583 = vmax.f32 %v1581, %v1582
      %v1584 = vrot.slane %v1583, 1
      %v1585 = vmax.f32 %v1583, %v1584
      %v1586 = vsel %vm1053, %v711, -inf
      %v1587 = vrot.slane %v1586, 4
      %v1588 = vmax.f32 %v1586, %v1587
      %v1589 = vrot.slane %v1588, 2
      %v1590 = vmax.f32 %v1588, %v1589
      %v1591 = vrot.slane %v1590, 1
      %v1592 = vmax.f32 %v1590, %v1591
      %v1593 = vsel %vm1053, %v719, -inf
      %v1594 = vrot.slane %v1593, 4
      %v1595 = vmax.f32 %v1593, %v1594
      %v1596 = vrot.slane %v1595, 2
      %v1597 = vmax.f32 %v1595, %v1596
      %v1598 = vrot.slane %v1597, 1
      %v1599 = vmax.f32 %v1597, %v1598
      %v1600 = vsel %vm1053, %v718, -inf
      %v1601 = vrot.slane %v1600, 4
      %v1602 = vmax.f32 %v1600, %v1601
      %v1603 = vrot.slane %v1602, 2
      %v1604 = vmax.f32 %v1602, %v1603
      %v1605 = vrot.slane %v1604, 1
      %v1606 = vmax.f32 %v1604, %v1605
      %v1607 = vsel %vm1053, %v720, -inf
      %v1608 = vrot.slane %v1607, 4
      %v1609 = vmax.f32 %v1607, %v1608
      %v1610 = vrot.slane %v1609, 2
      %v1611 = vmax.f32 %v1609, %v1610
      %v1612 = vrot.slane %v1611, 1
      %v1613 = vmax.f32 %v1611, %v1612
      %v1614 = vsel %vm1053, %v728, -inf
      %v1615 = vrot.slane %v1614, 4
      %v1616 = vmax.f32 %v1614, %v1615
      %v1617 = vrot.slane %v1616, 2
      %v1618 = vmax.f32 %v1616, %v1617
      %v1619 = vrot.slane %v1618, 1
      %v1620 = vmax.f32 %v1618, %v1619
      %v1621 = vsel %vm1053, %v736, -inf
      %v1622 = vrot.slane %v1621, 4
      %v1623 = vmax.f32 %v1621, %v1622
      %v1624 = vrot.slane %v1623, 2
      %v1625 = vmax.f32 %v1623, %v1624
      %v1626 = vrot.slane %v1625, 1
      %v1627 = vmax.f32 %v1625, %v1626
      %v1628 = vsel %vm1053, %v735, -inf
      %v1629 = vrot.slane %v1628, 4
      %v1630 = vmax.f32 %v1628, %v1629
      %v1631 = vrot.slane %v1630, 2
      %v1632 = vmax.f32 %v1630, %v1631
      %v1633 = vrot.slane %v1632, 1
      %v1634 = vmax.f32 %v1632, %v1633
      %v1635 = vsel %vm1053, %v737, -inf
      %v1636 = vrot.slane %v1635, 4
      %v1637 = vmax.f32 %v1635, %v1636
      %v1638 = vrot.slane %v1637, 2
      %v1639 = vmax.f32 %v1637, %v1638
      %v1640 = vrot.slane %v1639, 1
      %v1641 = vmax.f32 %v1639, %v1640
      %v1642 = vsel %vm1053, %v745, -inf
      %v1643 = vrot.slane %v1642, 4
      %v1644 = vmax.f32 %v1642, %v1643
      %v1645 = vrot.slane %v1644, 2
      %v1646 = vmax.f32 %v1644, %v1645
      %v1647 = vrot.slane %v1646, 1
      %v1648 = vmax.f32 %v1646, %v1647
      %v1649 = vsel %vm1053, %v753, -inf
      %v1650 = vrot.slane %v1649, 4
      %v1651 = vmax.f32 %v1649, %v1650
      %v1652 = vrot.slane %v1651, 2
      %v1653 = vmax.f32 %v1651, %v1652
      %v1654 = vrot.slane %v1653, 1
      %v1655 = vmax.f32 %v1653, %v1654
      %v1656 = vsel %vm1053, %v752, -inf
      %v1657 = vrot.slane %v1656, 4
      %v1658 = vmax.f32 %v1656, %v1657
      %v1659 = vrot.slane %v1658, 2
      %v1660 = vmax.f32 %v1658, %v1659
      %v1661 = vrot.slane %v1660, 1
      %v1662 = vmax.f32 %v1660, %v1661
      %v1663 = vsel %vm1053, %v754, -inf
      %v1664 = vrot.slane %v1663, 4
      %v1665 = vmax.f32 %v1663, %v1664
      %v1666 = vrot.slane %v1665, 2
      %v1667 = vmax.f32 %v1665, %v1666
      %v1668 = vrot.slane %v1667, 1
      %v1669 = vmax.f32 %v1667, %v1668
      %v1670 = vsel %vm1053, %v762, -inf
      %v1671 = vrot.slane %v1670, 4
      %v1672 = vmax.f32 %v1670, %v1671
      %v1673 = vrot.slane %v1672, 2
      %v1674 = vmax.f32 %v1672, %v1673
      %v1675 = vrot.slane %v1674, 1
      %v1676 = vmax.f32 %v1674, %v1675
      %v1677 = vsel %vm1053, %v770, -inf
      %v1678 = vrot.slane %v1677, 4
      %v1679 = vmax.f32 %v1677, %v1678
      %v1680 = vrot.slane %v1679, 2
      %v1681 = vmax.f32 %v1679, %v1680
      %v1682 = vrot.slane %v1681, 1
      %v1683 = vmax.f32 %v1681, %v1682
      %v1684 = vsel %vm1053, %v769, -inf
      %v1685 = vrot.slane %v1684, 4
      %v1686 = vmax.f32 %v1684, %v1685
      %v1687 = vrot.slane %v1686, 2
      %v1688 = vmax.f32 %v1686, %v1687
      %v1689 = vrot.slane %v1688, 1
      %v1690 = vmax.f32 %v1688, %v1689
      %v1691 = vsel %vm1053, %v771, -inf
      %v1692 = vrot.slane %v1691, 4
      %v1693 = vmax.f32 %v1691, %v1692
      %v1694 = vrot.slane %v1693, 2
      %v1695 = vmax.f32 %v1693, %v1694
      %v1696 = vrot.slane %v1695, 1
      %v1697 = vmax.f32 %v1695, %v1696
      %v1698 = vsel %vm1053, %v779, -inf
      %v1699 = vrot.slane %v1698, 4
      %v1700 = vmax.f32 %v1698, %v1699
      %v1701 = vrot.slane %v1700, 2
      %v1702 = vmax.f32 %v1700, %v1701
      %v1703 = vrot.slane %v1702, 1
      %v1704 = vmax.f32 %v1702, %v1703
      %v1705 = vsel %vm1053, %v787, -inf
      %v1706 = vrot.slane %v1705, 4
      %v1707 = vmax.f32 %v1705, %v1706
      %v1708 = vrot.slane %v1707, 2
      %v1709 = vmax.f32 %v1707, %v1708
      %v1710 = vrot.slane %v1709, 1
      %v1711 = vmax.f32 %v1709, %v1710
      %v1712 = vsel %vm1053, %v786, -inf
      %v1713 = vrot.slane %v1712, 4
      %v1714 = vmax.f32 %v1712, %v1713
      %v1715 = vrot.slane %v1714, 2
      %v1716 = vmax.f32 %v1714, %v1715
      %v1717 = vrot.slane %v1716, 1
      %v1718 = vmax.f32 %v1716, %v1717
      %v1719 = vsel %vm1053, %v788, -inf
      %v1720 = vrot.slane %v1719, 4
      %v1721 = vmax.f32 %v1719, %v1720
      %v1722 = vrot.slane %v1721, 2
      %v1723 = vmax.f32 %v1721, %v1722
      %v1724 = vrot.slane %v1723, 1
      %v1725 = vmax.f32 %v1723, %v1724
      %v1726 = vsel %vm1053, %v796, -inf
      %v1727 = vrot.slane %v1726, 4
      %v1728 = vmax.f32 %v1726, %v1727
      %v1729 = vrot.slane %v1728, 2
      %v1730 = vmax.f32 %v1728, %v1729
      %v1731 = vrot.slane %v1730, 1
      %v1732 = vmax.f32 %v1730, %v1731
      %v1733 = vsel %vm1053, %v804, -inf
      %v1734 = vrot.slane %v1733, 4
      %v1735 = vmax.f32 %v1733, %v1734
      %v1736 = vrot.slane %v1735, 2
      %v1737 = vmax.f32 %v1735, %v1736
      %v1738 = vrot.slane %v1737, 1
      %v1739 = vmax.f32 %v1737, %v1738
      %v1740 = vsel %vm1053, %v803, -inf
      %v1741 = vrot.slane %v1740, 4
      %v1742 = vmax.f32 %v1740, %v1741
      %v1743 = vrot.slane %v1742, 2
      %v1744 = vmax.f32 %v1742, %v1743
      %v1745 = vrot.slane %v1744, 1
      %v1746 = vmax.f32 %v1744, %v1745
      %v1747 = vsel %vm1053, %v805, -inf
      %v1748 = vrot.slane %v1747, 4
      %v1749 = vmax.f32 %v1747, %v1748
      %v1750 = vrot.slane %v1749, 2
      %v1751 = vmax.f32 %v1749, %v1750
      %v1752 = vrot.slane %v1751, 1
      %v1753 = vmax.f32 %v1751, %v1752
      %v1754 = vsel %vm1053, %v813, -inf
      %v1755 = vrot.slane %v1754, 4
      %v1756 = vmax.f32 %v1754, %v1755
      %v1757 = vrot.slane %v1756, 2
      %v1758 = vmax.f32 %v1756, %v1757
      %v1759 = vrot.slane %v1758, 1
      %v1760 = vmax.f32 %v1758, %v1759
      %v1761 = vsel %vm1053, %v821, -inf
      %v1762 = vrot.slane %v1761, 4
      %v1763 = vmax.f32 %v1761, %v1762
      %v1764 = vrot.slane %v1763, 2
      %v1765 = vmax.f32 %v1763, %v1764
      %v1766 = vrot.slane %v1765, 1
      %v1767 = vmax.f32 %v1765, %v1766
      %v1768 = vsel %vm1053, %v820, -inf
      %v1769 = vrot.slane %v1768, 4
      %v1770 = vmax.f32 %v1768, %v1769
      %v1771 = vrot.slane %v1770, 2
      %v1772 = vmax.f32 %v1770, %v1771
      %v1773 = vrot.slane %v1772, 1
      %v1774 = vmax.f32 %v1772, %v1773
      %v1775 = vsel %vm1053, %v822, -inf
      %v1776 = vrot.slane %v1775, 4
      %v1777 = vmax.f32 %v1775, %v1776
      %v1778 = vrot.slane %v1777, 2
      %v1779 = vmax.f32 %v1777, %v1778
      %v1780 = vrot.slane %v1779, 1
      %v1781 = vmax.f32 %v1779, %v1780
      %v1782 = vsel %vm1053, %v830, -inf
      %v1783 = vrot.slane %v1782, 4
      %v1784 = vmax.f32 %v1782, %v1783
      %v1785 = vrot.slane %v1784, 2
      %v1786 = vmax.f32 %v1784, %v1785
      %v1787 = vrot.slane %v1786, 1
      %v1788 = vmax.f32 %v1786, %v1787
      %v1789 = vsel %vm1053, %v838, -inf
      %v1790 = vrot.slane %v1789, 4
      %v1791 = vmax.f32 %v1789, %v1790
      %v1792 = vrot.slane %v1791, 2
      %v1793 = vmax.f32 %v1791, %v1792
      %v1794 = vrot.slane %v1793, 1
      %v1795 = vmax.f32 %v1793, %v1794
      %v1796 = vsel %vm1053, %v837, -inf
      %v1797 = vrot.slane %v1796, 4
      %v1798 = vmax.f32 %v1796, %v1797
      %v1799 = vrot.slane %v1798, 2
      %v1800 = vmax.f32 %v1798, %v1799
      %v1801 = vrot.slane %v1800, 1
      %v1802 = vmax.f32 %v1800, %v1801
      %v1803 = vsel %vm1053, %v839, -inf
      %v1804 = vrot.slane %v1803, 4
      %v1805 = vmax.f32 %v1803, %v1804
      %v1806 = vrot.slane %v1805, 2
      %v1807 = vmax.f32 %v1805, %v1806
      %v1808 = vrot.slane %v1807, 1
      %v1809 = vmax.f32 %v1807, %v1808
      %v1810 = vsel %vm1053, %v847, -inf
      %v1811 = vrot.slane %v1810, 4
      %v1812 = vmax.f32 %v1810, %v1811
      %v1813 = vrot.slane %v1812, 2
      %v1814 = vmax.f32 %v1812, %v1813
      %v1815 = vrot.slane %v1814, 1
      %v1816 = vmax.f32 %v1814, %v1815
      %v1817 = vsel %vm1053, %v855, -inf
      %v1818 = vrot.slane %v1817, 4
      %v1819 = vmax.f32 %v1817, %v1818
      %v1820 = vrot.slane %v1819, 2
      %v1821 = vmax.f32 %v1819, %v1820
      %v1822 = vrot.slane %v1821, 1
      %v1823 = vmax.f32 %v1821, %v1822
      %v1824 = vsel %vm1053, %v854, -inf
      %v1825 = vrot.slane %v1824, 4
      %v1826 = vmax.f32 %v1824, %v1825
      %v1827 = vrot.slane %v1826, 2
      %v1828 = vmax.f32 %v1826, %v1827
      %v1829 = vrot.slane %v1828, 1
      %v1830 = vmax.f32 %v1828, %v1829
      %v1831 = vsel %vm1053, %v856, -inf
      %v1832 = vrot.slane %v1831, 4
      %v1833 = vmax.f32 %v1831, %v1832
      %v1834 = vrot.slane %v1833, 2
      %v1835 = vmax.f32 %v1833, %v1834
      %v1836 = vrot.slane %v1835, 1
      %v1837 = vmax.f32 %v1835, %v1836
      %v1838 = vsel %vm1053, %v864, -inf
      %v1839 = vrot.slane %v1838, 4
      %v1840 = vmax.f32 %v1838, %v1839
      %v1841 = vrot.slane %v1840, 2
      %v1842 = vmax.f32 %v1840, %v1841
      %v1843 = vrot.slane %v1842, 1
      %v1844 = vmax.f32 %v1842, %v1843
      %v1845 = vsel %vm1053, %v872, -inf
      %v1846 = vrot.slane %v1845, 4
      %v1847 = vmax.f32 %v1845, %v1846
      %v1848 = vrot.slane %v1847, 2
      %v1849 = vmax.f32 %v1847, %v1848
      %v1850 = vrot.slane %v1849, 1
      %v1851 = vmax.f32 %v1849, %v1850
      %v1852 = vsel %vm1053, %v871, -inf
      %v1853 = vrot.slane %v1852, 4
      %v1854 = vmax.f32 %v1852, %v1853
      %v1855 = vrot.slane %v1854, 2
      %v1856 = vmax.f32 %v1854, %v1855
      %v1857 = vrot.slane %v1856, 1
      %v1858 = vmax.f32 %v1856, %v1857
      %v1859 = vsel %vm1053, %v873, -inf
      %v1860 = vrot.slane %v1859, 4
      %v1861 = vmax.f32 %v1859, %v1860
      %v1862 = vrot.slane %v1861, 2
      %v1863 = vmax.f32 %v1861, %v1862
      %v1864 = vrot.slane %v1863, 1
      %v1865 = vmax.f32 %v1863, %v1864
      %v1866 = vsel %vm1053, %v881, -inf
      %v1867 = vrot.slane %v1866, 4
      %v1868 = vmax.f32 %v1866, %v1867
      %v1869 = vrot.slane %v1868, 2
      %v1870 = vmax.f32 %v1868, %v1869
      %v1871 = vrot.slane %v1870, 1
      %v1872 = vmax.f32 %v1870, %v1871
      %v1873 = vsel %vm1053, %v889, -inf
      %v1874 = vrot.slane %v1873, 4
      %v1875 = vmax.f32 %v1873, %v1874
      %v1876 = vrot.slane %v1875, 2
      %v1877 = vmax.f32 %v1875, %v1876
      %v1878 = vrot.slane %v1877, 1
      %v1879 = vmax.f32 %v1877, %v1878
      %v1880 = vsel %vm1053, %v888, -inf
      %v1881 = vrot.slane %v1880, 4
      %v1882 = vmax.f32 %v1880, %v1881
      %v1883 = vrot.slane %v1882, 2
      %v1884 = vmax.f32 %v1882, %v1883
      %v1885 = vrot.slane %v1884, 1
      %v1886 = vmax.f32 %v1884, %v1885
      %v1887 = vsel %vm1053, %v890, -inf
      %v1888 = vrot.slane %v1887, 4
      %v1889 = vmax.f32 %v1887, %v1888
      %v1890 = vrot.slane %v1889, 2
      %v1891 = vmax.f32 %v1889, %v1890
      %v1892 = vrot.slane %v1891, 1
      %v1893 = vmax.f32 %v1891, %v1892
      %v1894 = vsel %vm1053, %v898, -inf
      %v1895 = vrot.slane %v1894, 4
      %v1896 = vmax.f32 %v1894, %v1895
      %v1897 = vrot.slane %v1896, 2
      %v1898 = vmax.f32 %v1896, %v1897
      %v1899 = vrot.slane %v1898, 1
      %v1900 = vmax.f32 %v1898, %v1899
      %v1901 = vsel %vm1053, %v906, -inf
      %v1902 = vrot.slane %v1901, 4
      %v1903 = vmax.f32 %v1901, %v1902
      %v1904 = vrot.slane %v1903, 2
      %v1905 = vmax.f32 %v1903, %v1904
      %v1906 = vrot.slane %v1905, 1
      %v1907 = vmax.f32 %v1905, %v1906
      %v1908 = vsel %vm1053, %v905, -inf
      %v1909 = vrot.slane %v1908, 4
      %v1910 = vmax.f32 %v1908, %v1909
      %v1911 = vrot.slane %v1910, 2
      %v1912 = vmax.f32 %v1910, %v1911
      %v1913 = vrot.slane %v1912, 1
      %v1914 = vmax.f32 %v1912, %v1913
      %v1915 = vsel %vm1053, %v907, -inf
      %v1916 = vrot.slane %v1915, 4
      %v1917 = vmax.f32 %v1915, %v1916
      %v1918 = vrot.slane %v1917, 2
      %v1919 = vmax.f32 %v1917, %v1918
      %v1920 = vrot.slane %v1919, 1
      %v1921 = vmax.f32 %v1919, %v1920
      %v1922 = vsel %vm1053, %v915, -inf
      %v1923 = vrot.slane %v1922, 4
      %v1924 = vmax.f32 %v1922, %v1923
      %v1925 = vrot.slane %v1924, 2
      %v1926 = vmax.f32 %v1924, %v1925
      %v1927 = vrot.slane %v1926, 1
      %v1928 = vmax.f32 %v1926, %v1927
      %v1929 = vsel %vm1053, %v923, -inf
      %v1930 = vrot.slane %v1929, 4
      %v1931 = vmax.f32 %v1929, %v1930
      %v1932 = vrot.slane %v1931, 2
      %v1933 = vmax.f32 %v1931, %v1932
      %v1934 = vrot.slane %v1933, 1
      %v1935 = vmax.f32 %v1933, %v1934
      %v1936 = vsel %vm1053, %v922, -inf
      %v1937 = vrot.slane %v1936, 4
      %v1938 = vmax.f32 %v1936, %v1937
      %v1939 = vrot.slane %v1938, 2
      %v1940 = vmax.f32 %v1938, %v1939
      %v1941 = vrot.slane %v1940, 1
      %v1942 = vmax.f32 %v1940, %v1941
      %v1943 = vsel %vm1053, %v924, -inf
      %v1944 = vrot.slane %v1943, 4
      %v1945 = vmax.f32 %v1943, %v1944
      %v1946 = vrot.slane %v1945, 2
      %v1947 = vmax.f32 %v1945, %v1946
      %v1948 = vrot.slane %v1947, 1
      %v1949 = vmax.f32 %v1947, %v1948
      %vm1950 = vcmask 31744
      %v1951 = vsel %vm1950, %v1060, -inf
      %v1952 = vsel %vm1950, %v1116, -inf
      %v1953 = vmax.f32 %v1951, %v1952
      %v1954 = vsel %vm1950, %v1067, -inf
      %v1955 = vsel %vm1950, %v1123, -inf
      %v1956 = vmax.f32 %v1954, %v1955
      %v1957 = vsel %vm1950, %v1074, -inf
      %v1958 = vsel %vm1950, %v1130, -inf
      %v1959 = vmax.f32 %v1957, %v1958
      %v1960 = vsel %vm1950, %v1081, -inf
      %v1961 = vsel %vm1950, %v1137, -inf
      %v1962 = vmax.f32 %v1960, %v1961
      %v1963 = vsel %vm1950, %v1088, -inf
      %v1964 = vsel %vm1950, %v1144, -inf
      %v1965 = vmax.f32 %v1963, %v1964
      %v1966 = vsel %vm1950, %v1095, -inf
      %v1967 = vsel %vm1950, %v1151, -inf
      %v1968 = vmax.f32 %v1966, %v1967
      %v1969 = vsel %vm1950, %v1102, -inf
      %v1970 = vsel %vm1950, %v1158, -inf
      %v1971 = vmax.f32 %v1969, %v1970
      %v1972 = vsel %vm1950, %v1109, -inf
      %v1973 = vsel %vm1950, %v1165, -inf
      %v1974 = vmax.f32 %v1972, %v1973
      %v1975 = vsel %vm1950, %v1172, -inf
      %v1976 = vsel %vm1950, %v1228, -inf
      %v1977 = vmax.f32 %v1975, %v1976
      %v1978 = vsel %vm1950, %v1179, -inf
      %v1979 = vsel %vm1950, %v1235, -inf
      %v1980 = vmax.f32 %v1978, %v1979
      %v1981 = vsel %vm1950, %v1186, -inf
      %v1982 = vsel %vm1950, %v1242, -inf
      %v1983 = vmax.f32 %v1981, %v1982
      %v1984 = vsel %vm1950, %v1193, -inf
      %v1985 = vsel %vm1950, %v1249, -inf
      %v1986 = vmax.f32 %v1984, %v1985
      %v1987 = vsel %vm1950, %v1200, -inf
      %v1988 = vsel %vm1950, %v1256, -inf
      %v1989 = vmax.f32 %v1987, %v1988
      %v1990 = vsel %vm1950, %v1207, -inf
      %v1991 = vsel %vm1950, %v1263, -inf
      %v1992 = vmax.f32 %v1990, %v1991
      %v1993 = vsel %vm1950, %v1214, -inf
      %v1994 = vsel %vm1950, %v1270, -inf
      %v1995 = vmax.f32 %v1993, %v1994
      %v1996 = vsel %vm1950, %v1221, -inf
      %v1997 = vsel %vm1950, %v1277, -inf
      %v1998 = vmax.f32 %v1996, %v1997
      %v1999 = vsel %vm1950, %v1284, -inf
      %v2000 = vsel %vm1950, %v1340, -inf
      %v2001 = vmax.f32 %v1999, %v2000
      %v2002 = vsel %vm1950, %v1291, -inf
      %v2003 = vsel %vm1950, %v1347, -inf
      %v2004 = vmax.f32 %v2002, %v2003
      %v2005 = vsel %vm1950, %v1298, -inf
      %v2006 = vsel %vm1950, %v1354, -inf
      %v2007 = vmax.f32 %v2005, %v2006
      %v2008 = vsel %vm1950, %v1305, -inf
      %v2009 = vsel %vm1950, %v1361, -inf
      %v2010 = vmax.f32 %v2008, %v2009
      %v2011 = vsel %vm1950, %v1312, -inf
      %v2012 = vsel %vm1950, %v1368, -inf
      %v2013 = vmax.f32 %v2011, %v2012
      %v2014 = vsel %vm1950, %v1319, -inf
      %v2015 = vsel %vm1950, %v1375, -inf
      %v2016 = vmax.f32 %v2014, %v2015
      %v2017 = vsel %vm1950, %v1326, -inf
      %v2018 = vsel %vm1950, %v1382, -inf
      %v2019 = vmax.f32 %v2017, %v2018
      %v2020 = vsel %vm1950, %v1333, -inf
      %v2021 = vsel %vm1950, %v1389, -inf
      %v2022 = vmax.f32 %v2020, %v2021
      %v2023 = vsel %vm1950, %v1396, -inf
      %v2024 = vsel %vm1950, %v1452, -inf
      %v2025 = vmax.f32 %v2023, %v2024
      %v2026 = vsel %vm1950, %v1403, -inf
      %v2027 = vsel %vm1950, %v1459, -inf
      %v2028 = vmax.f32 %v2026, %v2027
      %v2029 = vsel %vm1950, %v1410, -inf
      %v2030 = vsel %vm1950, %v1466, -inf
      %v2031 = vmax.f32 %v2029, %v2030
      %v2032 = vsel %vm1950, %v1417, -inf
      %v2033 = vsel %vm1950, %v1473, -inf
      %v2034 = vmax.f32 %v2032, %v2033
      %v2035 = vsel %vm1950, %v1424, -inf
      %v2036 = vsel %vm1950, %v1480, -inf
      %v2037 = vmax.f32 %v2035, %v2036
      %v2038 = vsel %vm1950, %v1431, -inf
      %v2039 = vsel %vm1950, %v1487, -inf
      %v2040 = vmax.f32 %v2038, %v2039
      %v2041 = vsel %vm1950, %v1438, -inf
      %v2042 = vsel %vm1950, %v1494, -inf
      %v2043 = vmax.f32 %v2041, %v2042
      %v2044 = vsel %vm1950, %v1445, -inf
      %v2045 = vsel %vm1950, %v1501, -inf
      %v2046 = vmax.f32 %v2044, %v2045
      %v2047 = vsel %vm1950, %v1508, -inf
      %v2048 = vsel %vm1950, %v1564, -inf
      %v2049 = vmax.f32 %v2047, %v2048
      %v2050 = vsel %vm1950, %v1515, -inf
      %v2051 = vsel %vm1950, %v1571, -inf
      %v2052 = vmax.f32 %v2050, %v2051
      %v2053 = vsel %vm1950, %v1522, -inf
      %v2054 = vsel %vm1950, %v1578, -inf
      %v2055 = vmax.f32 %v2053, %v2054
      %v2056 = vsel %vm1950, %v1529, -inf
      %v2057 = vsel %vm1950, %v1585, -inf
      %v2058 = vmax.f32 %v2056, %v2057
      %v2059 = vsel %vm1950, %v1536, -inf
      %v2060 = vsel %vm1950, %v1592, -inf
      %v2061 = vmax.f32 %v2059, %v2060
      %v2062 = vsel %vm1950, %v1543, -inf
      %v2063 = vsel %vm1950, %v1599, -inf
      %v2064 = vmax.f32 %v2062, %v2063
      %v2065 = vsel %vm1950, %v1550, -inf
      %v2066 = vsel %vm1950, %v1606, -inf
      %v2067 = vmax.f32 %v2065, %v2066
      %v2068 = vsel %vm1950, %v1557, -inf
      %v2069 = vsel %vm1950, %v1613, -inf
      %v2070 = vmax.f32 %v2068, %v2069
      %v2071 = vsel %vm1950, %v1620, -inf
      %v2072 = vsel %vm1950, %v1676, -inf
      %v2073 = vmax.f32 %v2071, %v2072
      %v2074 = vsel %vm1950, %v1627, -inf
      %v2075 = vsel %vm1950, %v1683, -inf
      %v2076 = vmax.f32 %v2074, %v2075
      %v2077 = vsel %vm1950, %v1634, -inf
      %v2078 = vsel %vm1950, %v1690, -inf
      %v2079 = vmax.f32 %v2077, %v2078
      %v2080 = vsel %vm1950, %v1641, -inf
      %v2081 = vsel %vm1950, %v1697, -inf
      %v2082 = vmax.f32 %v2080, %v2081
      %v2083 = vsel %vm1950, %v1648, -inf
      %v2084 = vsel %vm1950, %v1704, -inf
      %v2085 = vmax.f32 %v2083, %v2084
      %v2086 = vsel %vm1950, %v1655, -inf
      %v2087 = vsel %vm1950, %v1711, -inf
      %v2088 = vmax.f32 %v2086, %v2087
      %v2089 = vsel %vm1950, %v1662, -inf
      %v2090 = vsel %vm1950, %v1718, -inf
      %v2091 = vmax.f32 %v2089, %v2090
      %v2092 = vsel %vm1950, %v1669, -inf
      %v2093 = vsel %vm1950, %v1725, -inf
      %v2094 = vmax.f32 %v2092, %v2093
      %v2095 = vsel %vm1950, %v1732, -inf
      %v2096 = vsel %vm1950, %v1788, -inf
      %v2097 = vmax.f32 %v2095, %v2096
      %v2098 = vsel %vm1950, %v1739, -inf
      %v2099 = vsel %vm1950, %v1795, -inf
      %v2100 = vmax.f32 %v2098, %v2099
      %v2101 = vsel %vm1950, %v1746, -inf
      %v2102 = vsel %vm1950, %v1802, -inf
      %v2103 = vmax.f32 %v2101, %v2102
      %v2104 = vsel %vm1950, %v1753, -inf
      %v2105 = vsel %vm1950, %v1809, -inf
      %v2106 = vmax.f32 %v2104, %v2105
      %v2107 = vsel %vm1950, %v1760, -inf
      %v2108 = vsel %vm1950, %v1816, -inf
      %v2109 = vmax.f32 %v2107, %v2108
      %v2110 = vsel %vm1950, %v1767, -inf
      %v2111 = vsel %vm1950, %v1823, -inf
      %v2112 = vmax.f32 %v2110, %v2111
      %v2113 = vsel %vm1950, %v1774, -inf
      %v2114 = vsel %vm1950, %v1830, -inf
      %v2115 = vmax.f32 %v2113, %v2114
      %v2116 = vsel %vm1950, %v1781, -inf
      %v2117 = vsel %vm1950, %v1837, -inf
      %v2118 = vmax.f32 %v2116, %v2117
      %v2119 = vsel %vm1950, %v1844, -inf
      %v2120 = vsel %vm1950, %v1900, -inf
      %v2121 = vmax.f32 %v2119, %v2120
      %v2122 = vsel %vm1950, %v1851, -inf
      %v2123 = vsel %vm1950, %v1907, -inf
      %v2124 = vmax.f32 %v2122, %v2123
      %v2125 = vsel %vm1950, %v1858, -inf
      %v2126 = vsel %vm1950, %v1914, -inf
      %v2127 = vmax.f32 %v2125, %v2126
      %v2128 = vsel %vm1950, %v1865, -inf
      %v2129 = vsel %vm1950, %v1921, -inf
      %v2130 = vmax.f32 %v2128, %v2129
      %v2131 = vsel %vm1950, %v1872, -inf
      %v2132 = vsel %vm1950, %v1928, -inf
      %v2133 = vmax.f32 %v2131, %v2132
      %v2134 = vsel %vm1950, %v1879, -inf
      %v2135 = vsel %vm1950, %v1935, -inf
      %v2136 = vmax.f32 %v2134, %v2135
      %v2137 = vsel %vm1950, %v1886, -inf
      %v2138 = vsel %vm1950, %v1942, -inf
      %v2139 = vmax.f32 %v2137, %v2138
      %v2140 = vsel %vm1950, %v1893, -inf
      %v2141 = vsel %vm1950, %v1949, -inf
      %v2142 = vmax.f32 %v2140, %v2141
      %v2143 = vpack.c.bf16 %v1953, %v1953
      %v2144 = vpack.c.bf16 %v1956, %v1956
      %v2145 = vpack.c.bf16 %v1959, %v1959
      %v2146 = vpack.c.bf16 %v1962, %v1962
      %v2147 = vpack.c.bf16 %v1965, %v1965
      %v2148 = vpack.c.bf16 %v1968, %v1968
      %v2149 = vpack.c.bf16 %v1971, %v1971
      %v2150 = vpack.c.bf16 %v1974, %v1974
      %v2151 = vpack.c.bf16 %v1977, %v1977
      %v2152 = vpack.c.bf16 %v1980, %v1980
      %v2153 = vpack.c.bf16 %v1983, %v1983
      %v2154 = vpack.c.bf16 %v1986, %v1986
      %v2155 = vpack.c.bf16 %v1989, %v1989
      %v2156 = vpack.c.bf16 %v1992, %v1992
      %v2157 = vpack.c.bf16 %v1995, %v1995
      %v2158 = vpack.c.bf16 %v1998, %v1998
      %v2159 = vpack.c.bf16 %v2001, %v2001
      %v2160 = vpack.c.bf16 %v2004, %v2004
      %v2161 = vpack.c.bf16 %v2007, %v2007
      %v2162 = vpack.c.bf16 %v2010, %v2010
      %v2163 = vpack.c.bf16 %v2013, %v2013
      %v2164 = vpack.c.bf16 %v2016, %v2016
      %v2165 = vpack.c.bf16 %v2019, %v2019
      %v2166 = vpack.c.bf16 %v2022, %v2022
      %v2167 = vpack.c.bf16 %v2025, %v2025
      %v2168 = vpack.c.bf16 %v2028, %v2028
      %v2169 = vpack.c.bf16 %v2031, %v2031
      %v2170 = vpack.c.bf16 %v2034, %v2034
      %v2171 = vpack.c.bf16 %v2037, %v2037
      %v2172 = vpack.c.bf16 %v2040, %v2040
      %v2173 = vpack.c.bf16 %v2043, %v2043
      %v2174 = vpack.c.bf16 %v2046, %v2046
      %v2175 = vpack.c.bf16 %v2049, %v2049
      %v2176 = vpack.c.bf16 %v2052, %v2052
      %v2177 = vpack.c.bf16 %v2055, %v2055
      %v2178 = vpack.c.bf16 %v2058, %v2058
      %v2179 = vpack.c.bf16 %v2061, %v2061
      %v2180 = vpack.c.bf16 %v2064, %v2064
      %v2181 = vpack.c.bf16 %v2067, %v2067
      %v2182 = vpack.c.bf16 %v2070, %v2070
      %v2183 = vpack.c.bf16 %v2073, %v2073
      %v2184 = vpack.c.bf16 %v2076, %v2076
      %v2185 = vpack.c.bf16 %v2079, %v2079
      %v2186 = vpack.c.bf16 %v2082, %v2082
      %v2187 = vpack.c.bf16 %v2085, %v2085
      %v2188 = vpack.c.bf16 %v2088, %v2088
      %v2189 = vpack.c.bf16 %v2091, %v2091
      %v2190 = vpack.c.bf16 %v2094, %v2094
      %v2191 = vpack.c.bf16 %v2097, %v2097
      %v2192 = vpack.c.bf16 %v2100, %v2100
      %v2193 = vpack.c.bf16 %v2103, %v2103
      %v2194 = vpack.c.bf16 %v2106, %v2106
      %v2195 = vpack.c.bf16 %v2109, %v2109
      %v2196 = vpack.c.bf16 %v2112, %v2112
      %v2197 = vpack.c.bf16 %v2115, %v2115
      %v2198 = vpack.c.bf16 %v2118, %v2118
      %v2199 = vpack.c.bf16 %v2121, %v2121
      %v2200 = vpack.c.bf16 %v2124, %v2124
      %v2201 = vpack.c.bf16 %v2127, %v2127
      %v2202 = vpack.c.bf16 %v2130, %v2130
      %v2203 = vpack.c.bf16 %v2133, %v2133
      %v2204 = vpack.c.bf16 %v2136, %v2136
      %v2205 = vpack.c.bf16 %v2139, %v2139
      %v2206 = vpack.c.bf16 %v2142, %v2142
      %v2271 = vunpack.c.l.b16 %v2143
      %v2272 = vunpack.c.l.b16 %v2144
      %v2273 = vunpack.c.l.b16 %v2145
      %v2274 = vunpack.c.l.b16 %v2146
      %v2275 = vunpack.c.l.b16 %v2147
      %v2276 = vunpack.c.l.b16 %v2148
      %v2277 = vunpack.c.l.b16 %v2149
      %v2278 = vunpack.c.l.b16 %v2150
      %v2279 = vunpack.c.l.b16 %v2151
      %v2280 = vunpack.c.l.b16 %v2152
      %v2281 = vunpack.c.l.b16 %v2153
      %v2282 = vunpack.c.l.b16 %v2154
      %v2283 = vunpack.c.l.b16 %v2155
      %v2284 = vunpack.c.l.b16 %v2156
      %v2285 = vunpack.c.l.b16 %v2157
      %v2286 = vunpack.c.l.b16 %v2158
      %v2287 = vunpack.c.l.b16 %v2159
      %v2288 = vunpack.c.l.b16 %v2160
      %v2289 = vunpack.c.l.b16 %v2161
      %v2290 = vunpack.c.l.b16 %v2162
      %v2291 = vunpack.c.l.b16 %v2163
      %v2292 = vunpack.c.l.b16 %v2164
      %v2293 = vunpack.c.l.b16 %v2165
      %v2294 = vunpack.c.l.b16 %v2166
      %v2295 = vunpack.c.l.b16 %v2167
      %v2296 = vunpack.c.l.b16 %v2168
      %v2297 = vunpack.c.l.b16 %v2169
      %v2298 = vunpack.c.l.b16 %v2170
      %v2299 = vunpack.c.l.b16 %v2171
      %v2300 = vunpack.c.l.b16 %v2172
      %v2301 = vunpack.c.l.b16 %v2173
      %v2302 = vunpack.c.l.b16 %v2174
      %v2303 = vunpack.c.l.b16 %v2175
      %v2304 = vunpack.c.l.b16 %v2176
      %v2305 = vunpack.c.l.b16 %v2177
      %v2306 = vunpack.c.l.b16 %v2178
      %v2307 = vunpack.c.l.b16 %v2179
      %v2308 = vunpack.c.l.b16 %v2180
      %v2309 = vunpack.c.l.b16 %v2181
      %v2310 = vunpack.c.l.b16 %v2182
      %v2311 = vunpack.c.l.b16 %v2183
      %v2312 = vunpack.c.l.b16 %v2184
      %v2313 = vunpack.c.l.b16 %v2185
      %v2314 = vunpack.c.l.b16 %v2186
      %v2315 = vunpack.c.l.b16 %v2187
      %v2316 = vunpack.c.l.b16 %v2188
      %v2317 = vunpack.c.l.b16 %v2189
      %v2318 = vunpack.c.l.b16 %v2190
      %v2319 = vunpack.c.l.b16 %v2191
      %v2320 = vunpack.c.l.b16 %v2192
      %v2321 = vunpack.c.l.b16 %v2193
      %v2322 = vunpack.c.l.b16 %v2194
      %v2323 = vunpack.c.l.b16 %v2195
      %v2324 = vunpack.c.l.b16 %v2196
      %v2325 = vunpack.c.l.b16 %v2197
      %v2326 = vunpack.c.l.b16 %v2198
      %v2327 = vunpack.c.l.b16 %v2199
      %v2328 = vunpack.c.l.b16 %v2200
      %v2329 = vunpack.c.l.b16 %v2201
      %v2330 = vunpack.c.l.b16 %v2202
      %v2331 = vunpack.c.l.b16 %v2203
      %v2332 = vunpack.c.l.b16 %v2204
      %v2333 = vunpack.c.l.b16 %v2205
      %v2334 = vunpack.c.l.b16 %v2206
      %vm2335 = vcmask 1041409
      %v2336 = vsel %vm2335, %v2272, %v2271
      %vm2337 = vcmask 1042434
      %v2338 = vsel %vm2337, %v2273, %v2336
      %vm2339 = vcmask 1043459
      %v2340 = vsel %vm2339, %v2274, %v2338
      %vm2341 = vcmask 1044484
      %v2342 = vsel %vm2341, %v2275, %v2340
      %vm2343 = vcmask 1045509
      %v2344 = vsel %vm2343, %v2276, %v2342
      %vm2345 = vcmask 1046534
      %v2346 = vsel %vm2345, %v2277, %v2344
      %vm2347 = vcmask 1047559
      %v2348 = vsel %vm2347, %v2278, %v2346
      %v2349 = vsel %vm2335, %v2280, %v2279
      %v2350 = vsel %vm2337, %v2281, %v2349
      %v2351 = vsel %vm2339, %v2282, %v2350
      %v2352 = vsel %vm2341, %v2283, %v2351
      %v2353 = vsel %vm2343, %v2284, %v2352
      %v2354 = vsel %vm2345, %v2285, %v2353
      %v2355 = vsel %vm2347, %v2286, %v2354
      %v2356 = vsel %vm2335, %v2288, %v2287
      %v2357 = vsel %vm2337, %v2289, %v2356
      %v2358 = vsel %vm2339, %v2290, %v2357
      %v2359 = vsel %vm2341, %v2291, %v2358
      %v2360 = vsel %vm2343, %v2292, %v2359
      %v2361 = vsel %vm2345, %v2293, %v2360
      %v2362 = vsel %vm2347, %v2294, %v2361
      %v2363 = vsel %vm2335, %v2296, %v2295
      %v2364 = vsel %vm2337, %v2297, %v2363
      %v2365 = vsel %vm2339, %v2298, %v2364
      %v2366 = vsel %vm2341, %v2299, %v2365
      %v2367 = vsel %vm2343, %v2300, %v2366
      %v2368 = vsel %vm2345, %v2301, %v2367
      %v2369 = vsel %vm2347, %v2302, %v2368
      %v2370 = vsel %vm2335, %v2304, %v2303
      %v2371 = vsel %vm2337, %v2305, %v2370
      %v2372 = vsel %vm2339, %v2306, %v2371
      %v2373 = vsel %vm2341, %v2307, %v2372
      %v2374 = vsel %vm2343, %v2308, %v2373
      %v2375 = vsel %vm2345, %v2309, %v2374
      %v2376 = vsel %vm2347, %v2310, %v2375
      %v2377 = vsel %vm2335, %v2312, %v2311
      %v2378 = vsel %vm2337, %v2313, %v2377
      %v2379 = vsel %vm2339, %v2314, %v2378
      %v2380 = vsel %vm2341, %v2315, %v2379
      %v2381 = vsel %vm2343, %v2316, %v2380
      %v2382 = vsel %vm2345, %v2317, %v2381
      %v2383 = vsel %vm2347, %v2318, %v2382
      %v2384 = vsel %vm2335, %v2320, %v2319
      %v2385 = vsel %vm2337, %v2321, %v2384
      %v2386 = vsel %vm2339, %v2322, %v2385
      %v2387 = vsel %vm2341, %v2323, %v2386
      %v2388 = vsel %vm2343, %v2324, %v2387
      %v2389 = vsel %vm2345, %v2325, %v2388
      %v2390 = vsel %vm2347, %v2326, %v2389
      %v2391 = vsel %vm2335, %v2328, %v2327
      %v2392 = vsel %vm2337, %v2329, %v2391
      %v2393 = vsel %vm2339, %v2330, %v2392
      %v2394 = vsel %vm2341, %v2331, %v2393
      %v2395 = vsel %vm2343, %v2332, %v2394
      %v2396 = vsel %vm2345, %v2333, %v2395
      %v2397 = vsel %vm2347, %v2334, %v2396
      %v2398 = vpack.c.b16 %v2348, %v2348
      %v2399 = vpack.c.b16 %v2355, %v2355
      %v2400 = vpack.c.b16 %v2362, %v2362
      %v2401 = vpack.c.b16 %v2369, %v2369
      %v2402 = vpack.c.b16 %v2376, %v2376
      %v2403 = vpack.c.b16 %v2383, %v2383
      %v2404 = vpack.c.b16 %v2390, %v2390
      %v2405 = vpack.c.b16 %v2397, %v2397
      %v2407 = vshrl.u32 0, 16
      %v2409 = vrot.slane %v2407, 7
      %v2410 = vshll.u32 0, 16
      %v2412 = vor.u32 %v2409, %v2410
      %v2414 = vshrl.u32 %v2398, 16
      %v2416 = vrot.slane %v2414, 7
      %v2417 = vshll.u32 %v2398, 16
      %v2419 = vor.u32 %v2416, %v2417
      %v2421 = vshrl.u32 %v2399, 16
      %v2423 = vrot.slane %v2421, 7
      %v2424 = vshll.u32 %v2399, 16
      %v2426 = vor.u32 %v2423, %v2424
      %v2428 = vshrl.u32 %v2400, 16
      %v2430 = vrot.slane %v2428, 7
      %v2431 = vshll.u32 %v2400, 16
      %v2433 = vor.u32 %v2430, %v2431
      %v2435 = vshrl.u32 %v2401, 16
      %v2437 = vrot.slane %v2435, 7
      %v2438 = vshll.u32 %v2401, 16
      %v2440 = vor.u32 %v2437, %v2438
      %v2442 = vshrl.u32 %v2402, 16
      %v2444 = vrot.slane %v2442, 7
      %v2445 = vshll.u32 %v2402, 16
      %v2447 = vor.u32 %v2444, %v2445
      %v2449 = vshrl.u32 %v2403, 16
      %v2451 = vrot.slane %v2449, 7
      %v2452 = vshll.u32 %v2403, 16
      %v2454 = vor.u32 %v2451, %v2452
      %v2456 = vshrl.u32 %v2404, 16
      %v2458 = vrot.slane %v2456, 7
      %v2459 = vshll.u32 %v2404, 16
      %v2461 = vor.u32 %v2458, %v2459
      %v2463 = vshrl.u32 %v2405, 16
      %v2465 = vrot.slane %v2463, 7
      %v2466 = vshll.u32 %v2405, 16
      %v2468 = vor.u32 %v2465, %v2466
      %vm2478 = vcmask 1040384
      %vm2479 = vsmask.f32 256
      %vm2480 = vmand %vm2478, %vm2479
      %v2481 = vsel %vm2480, 0, %v2412
      %v2482 = vsel %vm2480, 0, %v2419
      %v2483 = vsel %vm2480, 0, %v2426
      %v2484 = vsel %vm2480, 0, %v2433
      %v2485 = vsel %vm2480, 0, %v2440
      %v2486 = vsel %vm2480, 0, %v2447
      %v2487 = vsel %vm2480, 0, %v2454
      %v2488 = vsel %vm2480, 0, %v2461
      %v2489 = vsel %vm2480, 0, %v2468
      %vm2490 = vcmask 1044480
      %vm2491 = vsmask.f32 4352
      %vm2492 = vmand %vm2490, %vm2491
      %v2493 = vsel %vm2492, %v2481, 0
      %v2494 = vsel %vm2492, %v2482, 0
      %v2495 = vsel %vm2492, %v2483, 0
      %v2496 = vsel %vm2492, %v2484, 0
      %v2497 = vsel %vm2492, %v2485, 0
      %v2498 = vsel %vm2492, %v2486, 0
      %v2499 = vsel %vm2492, %v2487, 0
      %v2500 = vsel %vm2492, %v2488, 0
      %v2501 = vsel %vm2492, %v2489, 0
      %v2503 = vshrl.u32 %v2493, 16
      %v2505 = vshll.u32 %v2493, 16
      %v2507 = vrot.slane %v2505, 1
      %v2508 = vor.u32 %v2503, %v2507
      %v2510 = vshrl.u32 %v2494, 16
      %v2512 = vshll.u32 %v2494, 16
      %v2514 = vrot.slane %v2512, 1
      %v2515 = vor.u32 %v2510, %v2514
      %v2517 = vshrl.u32 %v2495, 16
      %v2519 = vshll.u32 %v2495, 16
      %v2521 = vrot.slane %v2519, 1
      %v2522 = vor.u32 %v2517, %v2521
      %v2524 = vshrl.u32 %v2496, 16
      %v2526 = vshll.u32 %v2496, 16
      %v2528 = vrot.slane %v2526, 1
      %v2529 = vor.u32 %v2524, %v2528
      %v2531 = vshrl.u32 %v2497, 16
      %v2533 = vshll.u32 %v2497, 16
      %v2535 = vrot.slane %v2533, 1
      %v2536 = vor.u32 %v2531, %v2535
      %v2538 = vshrl.u32 %v2498, 16
      %v2540 = vshll.u32 %v2498, 16
      %v2542 = vrot.slane %v2540, 1
      %v2543 = vor.u32 %v2538, %v2542
      %v2545 = vshrl.u32 %v2499, 16
      %v2547 = vshll.u32 %v2499, 16
      %v2549 = vrot.slane %v2547, 1
      %v2550 = vor.u32 %v2545, %v2549
      %v2552 = vshrl.u32 %v2500, 16
      %v2554 = vshll.u32 %v2500, 16
      %v2556 = vrot.slane %v2554, 1
      %v2557 = vor.u32 %v2552, %v2556
      %2558 = vrot.lane.b32.xlu0 %v2508, 4
      %v2559 = vpop.permute.xlu0 %2558
      %2560 = vrot.lane.b32.xlu0 %v2515, 4
      %v2561 = vpop.permute.xlu0 %2560
      %2562 = vrot.lane.b32.xlu0 %v2522, 4
      %v2563 = vpop.permute.xlu0 %2562
      %2564 = vrot.lane.b32.xlu0 %v2529, 4
      %v2565 = vpop.permute.xlu0 %2564
      %2566 = vrot.lane.b32.xlu0 %v2536, 4
      %v2567 = vpop.permute.xlu0 %2566
      %2568 = vrot.lane.b32.xlu0 %v2543, 4
      %v2569 = vpop.permute.xlu0 %2568
      %2570 = vrot.lane.b32.xlu0 %v2550, 4
      %v2571 = vpop.permute.xlu0 %2570
      %2572 = vrot.lane.b32.xlu0 %v2557, 4
      %v2573 = vpop.permute.xlu0 %2572
      %v2582 = vrot.slane %v2493, 1
      %v2583 = vrot.slane %v2494, 1
      %v2584 = vrot.slane %v2495, 1
      %v2585 = vrot.slane %v2496, 1
      %v2586 = vrot.slane %v2497, 1
      %v2587 = vrot.slane %v2498, 1
      %v2588 = vrot.slane %v2499, 1
      %v2589 = vrot.slane %v2500, 1
      %2590 = vrot.lane.b32.xlu0 %v2582, 8
      %v2591 = vpop.permute.xlu0 %2590
      %2592 = vrot.lane.b32.xlu0 %v2583, 8
      %v2593 = vpop.permute.xlu0 %2592
      %2594 = vrot.lane.b32.xlu0 %v2584, 8
      %v2595 = vpop.permute.xlu0 %2594
      %2596 = vrot.lane.b32.xlu0 %v2585, 8
      %v2597 = vpop.permute.xlu0 %2596
      %2598 = vrot.lane.b32.xlu0 %v2586, 8
      %v2599 = vpop.permute.xlu0 %2598
      %2600 = vrot.lane.b32.xlu0 %v2587, 8
      %v2601 = vpop.permute.xlu0 %2600
      %2602 = vrot.lane.b32.xlu0 %v2588, 8
      %v2603 = vpop.permute.xlu0 %2602
      %2604 = vrot.lane.b32.xlu0 %v2589, 8
      %v2605 = vpop.permute.xlu0 %2604
      %2607 = vrot.lane.b32.xlu0 %v2494, 12
      %v2608 = vpop.permute.xlu0 %2607
      %2609 = vrot.lane.b32.xlu0 %v2495, 12
      %v2610 = vpop.permute.xlu0 %2609
      %2611 = vrot.lane.b32.xlu0 %v2496, 12
      %v2612 = vpop.permute.xlu0 %2611
      %2613 = vrot.lane.b32.xlu0 %v2497, 12
      %v2614 = vpop.permute.xlu0 %2613
      %2615 = vrot.lane.b32.xlu0 %v2498, 12
      %v2616 = vpop.permute.xlu0 %2615
      %2617 = vrot.lane.b32.xlu0 %v2499, 12
      %v2618 = vpop.permute.xlu0 %2617
      %2619 = vrot.lane.b32.xlu0 %v2500, 12
      %v2620 = vpop.permute.xlu0 %2619
      %2621 = vrot.lane.b32.xlu0 %v2501, 12
      %v2622 = vpop.permute.xlu0 %2621
      %v2624 = vshrl.u32 %v2501, 16
      %v2626 = vshll.u32 %v2501, 16
      %v2628 = vrot.slane %v2626, 1
      %v2629 = vor.u32 %v2624, %v2628
      %2630 = vrot.lane.b32.xlu0 %v2515, 16
      %v2631 = vpop.permute.xlu0 %2630
      %2632 = vrot.lane.b32.xlu0 %v2522, 16
      %v2633 = vpop.permute.xlu0 %2632
      %2634 = vrot.lane.b32.xlu0 %v2529, 16
      %v2635 = vpop.permute.xlu0 %2634
      %2636 = vrot.lane.b32.xlu0 %v2536, 16
      %v2637 = vpop.permute.xlu0 %2636
      %2638 = vrot.lane.b32.xlu0 %v2543, 16
      %v2639 = vpop.permute.xlu0 %2638
      %2640 = vrot.lane.b32.xlu0 %v2550, 16
      %v2641 = vpop.permute.xlu0 %2640
      %2642 = vrot.lane.b32.xlu0 %v2557, 16
      %v2643 = vpop.permute.xlu0 %2642
      %2644 = vrot.lane.b32.xlu0 %v2629, 16
      %v2645 = vpop.permute.xlu0 %2644
      %v2646 = vrot.slane %v2501, 1
      %2647 = vrot.lane.b32.xlu0 %v2583, 20
      %v2648 = vpop.permute.xlu0 %2647
      %2649 = vrot.lane.b32.xlu0 %v2584, 20
      %v2650 = vpop.permute.xlu0 %2649
      %2651 = vrot.lane.b32.xlu0 %v2585, 20
      %v2652 = vpop.permute.xlu0 %2651
      %2653 = vrot.lane.b32.xlu0 %v2586, 20
      %v2654 = vpop.permute.xlu0 %2653
      %2655 = vrot.lane.b32.xlu0 %v2587, 20
      %v2656 = vpop.permute.xlu0 %2655
      %2657 = vrot.lane.b32.xlu0 %v2588, 20
      %v2658 = vpop.permute.xlu0 %2657
      %2659 = vrot.lane.b32.xlu0 %v2589, 20
      %v2660 = vpop.permute.xlu0 %2659
      %2661 = vrot.lane.b32.xlu0 %v2646, 20
      %v2662 = vpop.permute.xlu0 %2661
      %2663 = vrot.lane.b32.xlu0 %v2495, 24
      %v2664 = vpop.permute.xlu0 %2663
      %2665 = vrot.lane.b32.xlu0 %v2496, 24
      %v2666 = vpop.permute.xlu0 %2665
      %2667 = vrot.lane.b32.xlu0 %v2497, 24
      %v2668 = vpop.permute.xlu0 %2667
      %2669 = vrot.lane.b32.xlu0 %v2498, 24
      %v2670 = vpop.permute.xlu0 %2669
      %2671 = vrot.lane.b32.xlu0 %v2499, 24
      %v2672 = vpop.permute.xlu0 %2671
      %2673 = vrot.lane.b32.xlu0 %v2500, 24
      %v2674 = vpop.permute.xlu0 %2673
      %2675 = vrot.lane.b32.xlu0 %v2501, 24
      %v2676 = vpop.permute.xlu0 %2675
      %2677 = vrot.lane.b32.xlu0 %v2493, 24
      %v2678 = vpop.permute.xlu0 %2677
      %2679 = vrot.lane.b32.xlu0 %v2522, 28
      %v2680 = vpop.permute.xlu0 %2679
      %2681 = vrot.lane.b32.xlu0 %v2529, 28
      %v2682 = vpop.permute.xlu0 %2681
      %2683 = vrot.lane.b32.xlu0 %v2536, 28
      %v2684 = vpop.permute.xlu0 %2683
      %2685 = vrot.lane.b32.xlu0 %v2543, 28
      %v2686 = vpop.permute.xlu0 %2685
      %2687 = vrot.lane.b32.xlu0 %v2550, 28
      %v2688 = vpop.permute.xlu0 %2687
      %2689 = vrot.lane.b32.xlu0 %v2557, 28
      %v2690 = vpop.permute.xlu0 %2689
      %2691 = vrot.lane.b32.xlu0 %v2629, 28
      %v2692 = vpop.permute.xlu0 %2691
      %2693 = vrot.lane.b32.xlu0 %v2508, 28
      %v2694 = vpop.permute.xlu0 %2693
      %2695 = vrot.lane.b32.xlu0 %v2584, 32
      %v2696 = vpop.permute.xlu0 %2695
      %2697 = vrot.lane.b32.xlu0 %v2585, 32
      %v2698 = vpop.permute.xlu0 %2697
      %2699 = vrot.lane.b32.xlu0 %v2586, 32
      %v2700 = vpop.permute.xlu0 %2699
      %2701 = vrot.lane.b32.xlu0 %v2587, 32
      %v2702 = vpop.permute.xlu0 %2701
      %2703 = vrot.lane.b32.xlu0 %v2588, 32
      %v2704 = vpop.permute.xlu0 %2703
      %2705 = vrot.lane.b32.xlu0 %v2589, 32
      %v2706 = vpop.permute.xlu0 %2705
      %2707 = vrot.lane.b32.xlu0 %v2646, 32
      %v2708 = vpop.permute.xlu0 %2707
      %2709 = vrot.lane.b32.xlu0 %v2582, 32
      %v2710 = vpop.permute.xlu0 %2709
      %v2712 = vsel %vm1950, %v2493, %v2559
      %v2714 = vsel %vm1950, %v2494, %v2561
      %v2716 = vsel %vm1950, %v2495, %v2563
      %v2718 = vsel %vm1950, %v2496, %v2565
      %v2720 = vsel %vm1950, %v2497, %v2567
      %v2722 = vsel %vm1950, %v2498, %v2569
      %v2724 = vsel %vm1950, %v2499, %v2571
      %v2726 = vsel %vm1950, %v2500, %v2573
      %vm2727 = vcmask 64512
      %v2729 = vsel %vm2727, %v2712, %v2591
      %v2731 = vsel %vm2727, %v2714, %v2593
      %v2733 = vsel %vm2727, %v2716, %v2595
      %v2735 = vsel %vm2727, %v2718, %v2597
      %v2737 = vsel %vm2727, %v2720, %v2599
      %v2739 = vsel %vm2727, %v2722, %v2601
      %v2741 = vsel %vm2727, %v2724, %v2603
      %v2743 = vsel %vm2727, %v2726, %v2605
      %vm2744 = vcmask 97280
      %v2746 = vsel %vm2744, %v2729, %v2608
      %v2748 = vsel %vm2744, %v2731, %v2610
      %v2750 = vsel %vm2744, %v2733, %v2612
      %v2752 = vsel %vm2744, %v2735, %v2614
      %v2754 = vsel %vm2744, %v2737, %v2616
      %v2756 = vsel %vm2744, %v2739, %v2618
      %v2758 = vsel %vm2744, %v2741, %v2620
      %v2760 = vsel %vm2744, %v2743, %v2622
      %vm2761 = vcmask 130048
      %v2763 = vsel %vm2761, %v2746, %v2631
      %v2765 = vsel %vm2761, %v2748, %v2633
      %v2767 = vsel %vm2761, %v2750, %v2635
      %v2769 = vsel %vm2761, %v2752, %v2637
      %v2771 = vsel %vm2761, %v2754, %v2639
      %v2773 = vsel %vm2761, %v2756, %v2641
      %v2775 = vsel %vm2761, %v2758, %v2643
      %v2777 = vsel %vm2761, %v2760, %v2645
      %vm2778 = vcmask 162816
      %v2780 = vsel %vm2778, %v2763, %v2648
      %v2782 = vsel %vm2778, %v2765, %v2650
      %v2784 = vsel %vm2778, %v2767, %v2652
      %v2786 = vsel %vm2778, %v2769, %v2654
      %v2788 = vsel %vm2778, %v2771, %v2656
      %v2790 = vsel %vm2778, %v2773, %v2658
      %v2792 = vsel %vm2778, %v2775, %v2660
      %v2794 = vsel %vm2778, %v2777, %v2662
      %vm2795 = vcmask 195584
      %v2797 = vsel %vm2795, %v2780, %v2664
      %v2799 = vsel %vm2795, %v2782, %v2666
      %v2801 = vsel %vm2795, %v2784, %v2668
      %v2803 = vsel %vm2795, %v2786, %v2670
      %v2805 = vsel %vm2795, %v2788, %v2672
      %v2807 = vsel %vm2795, %v2790, %v2674
      %v2809 = vsel %vm2795, %v2792, %v2676
      %v2811 = vsel %vm2795, %v2794, %v2678
      %vm2812 = vcmask 228352
      %v2814 = vsel %vm2812, %v2797, %v2680
      %v2816 = vsel %vm2812, %v2799, %v2682
      %v2818 = vsel %vm2812, %v2801, %v2684
      %v2820 = vsel %vm2812, %v2803, %v2686
      %v2822 = vsel %vm2812, %v2805, %v2688
      %v2824 = vsel %vm2812, %v2807, %v2690
      %v2826 = vsel %vm2812, %v2809, %v2692
      %v2828 = vsel %vm2812, %v2811, %v2694
      %vm2829 = vcmask 261120
      %v2831 = vsel %vm2829, %v2814, %v2696
      %v2833 = vsel %vm2829, %v2816, %v2698
      %v2835 = vsel %vm2829, %v2818, %v2700
      %v2837 = vsel %vm2829, %v2820, %v2702
      %v2839 = vsel %vm2829, %v2822, %v2704
      %v2841 = vsel %vm2829, %v2824, %v2706
      %v2843 = vsel %vm2829, %v2826, %v2708
      %v2845 = vsel %vm2829, %v2828, %v2710
      %v2846 = vld [vmem:[%s1] sm:$0xf]
      %v2847 = vld [vmem:[%s1 + $0x4] sm:$0xf]
      %v2848 = vld [vmem:[%s1 + $0x8] sm:$0xf]
      %v2849 = vld [vmem:[%s1 + $0xc] sm:$0xf]
      %v2850 = vld [vmem:[%s1 + $0x10] sm:$0x3]
      %v2859 = vunpack.c.l.b16 %v2831
      %v2860 = vunpack.c.l.b16 %v2833
      %v2861 = vunpack.c.l.b16 %v2835
      %v2862 = vunpack.c.l.b16 %v2837
      %v2863 = vunpack.c.l.b16 %v2839
      %v2864 = vunpack.c.l.b16 %v2841
      %v2865 = vunpack.c.l.b16 %v2843
      %v2866 = vunpack.c.l.b16 %v2845
      %v2867 = vpack.c.b16 %v2860, %v2859
      %v2868 = vpack.c.b16 %v2862, %v2861
      %v2869 = vpack.c.b16 %v2864, %v2863
      %v2870 = vpack.c.b16 %v2866, %v2865
      %v2876 = vunpack.c.l.b16 %v2846
      %v2877 = vunpack.c.l.b16 %v2847
      %v2878 = vunpack.c.l.b16 %v2848
      %v2879 = vunpack.c.l.b16 %v2849
      %v2880 = vunpack.c.l.b16 %v2850
      %v2881 = vpack.c.b16 %v2877, %v2876
      %v2882 = vpack.c.b16 %v2879, %v2878
      %v2883 = vpack.c.b16 %v2880, %v2880
      %vm2886 = vcmask 293888
      %v2888 = vsel %vm2886, %v2867, 0
      %v2891 = vsel %vm2886, %v2868, 0
      %v2894 = vsel %vm2886, %v2869, 0
      %v2897 = vsel %vm2886, %v2870, 0
      %vm2899 = vcmask 1041408
      %v2901 = vsel %vm2899, %v2883, 0
      %2903 = vmatprep.subr.bf16.mxu0 0
      %2904 = vmatpush1.bf16.msra.mxu0 0
      %2905 = vmatprep.subr.bf16.mxu0 0
      %2906 = vmatpush1.bf16.msra.mxu0 0
      %2907 = vmatprep.subr.bf16.mxu0 0
      %2908 = vmatpush1.bf16.msra.mxu0 0
      %2909 = vmatprep.subr.bf16.mxu0 0
      %2910 = vmatpush1.bf16.msra.mxu0 0
      %2911 = vmatprep.subr.bf16.mxu0 0
      %2912 = vmatpush1.bf16.msra.mxu0 0
      %2913 = vmatprep.subr.bf16.mxu0 0
      %2914 = vmatpush1.bf16.msra.mxu0 %v2901
      %2915 = vmatprep.subr.bf16.mxu0 0
      %2916 = vmatpush1.bf16.msra.mxu0 %v2882
      %2917 = vmatprep.subr.bf16.mxu0 0
      %2918 = vmatpush1.bf16.msra.mxu0 %v2881
      %2919 = vmatprep.subr.bf16.mxu0 0
      %2920 = vmatpush2.bf16.msra.mxu0 0
      %2921 = vmatprep.subr.bf16.mxu0 0
      %2922 = vmatpush2.bf16.msra.mxu0 0
      %2923 = vmatprep.subr.bf16.mxu0 0
      %2924 = vmatpush2.bf16.msra.mxu0 0
      %2925 = vmatprep.subr.bf16.mxu0 0
      %2926 = vmatpush2.bf16.msra.mxu0 0
      %2927 = vmatprep.subr.bf16.mxu0 0
      %2928 = vmatpush2.bf16.msra.mxu0 0
      %2929 = vmatprep.subr.bf16.mxu0 0
      %2930 = vmatpush2.bf16.msra.mxu0 0
      %2931 = vmatprep.subr.bf16.mxu0 0
      %2932 = vmatpush2.bf16.msra.mxu0 0
      %2933 = vmatprep.subr.bf16.mxu0 0
      %2934 = vmatpush2.bf16.msra.mxu0 0
      %2935 = vmatprep.mubr.bf16.mxu0 0
      %2936 = vmatmul.mubr.bf16.gmra.mxu0 %v2888
      %v2937 = vpop.f32.mrf.mxu0
      %v2938 = vadd.f32 0.0, %v2937
      %v2939 = vpop.f32.mrf.mxu0
      %v2940 = vpop.f32.mrf.mxu0
      %v2941 = vadd.f32 0.0, %v2940
      %v2942 = vpop.f32.mrf.mxu0
      %2943 = vmatprep.mubr.bf16.mxu0 0
      %2944 = vmatmul.mubr.bf16.gmra.mxu0 %v2891
      %v2945 = vpop.f32.mrf.mxu0
      %v2946 = vadd.f32 0.0, %v2945
      %v2947 = vpop.f32.mrf.mxu0
      %v2948 = vpop.f32.mrf.mxu0
      %v2949 = vadd.f32 0.0, %v2948
      %v2950 = vpop.f32.mrf.mxu0
      %2951 = vmatprep.mubr.bf16.mxu0 0
      %2952 = vmatmul.mubr.bf16.gmra.mxu0 %v2894
      %v2953 = vpop.f32.mrf.mxu0
      %v2954 = vadd.f32 0.0, %v2953
      %v2955 = vpop.f32.mrf.mxu0
      %v2956 = vpop.f32.mrf.mxu0
      %v2957 = vadd.f32 0.0, %v2956
      %v2958 = vpop.f32.mrf.mxu0
      %2959 = vmatprep.mubr.bf16.mxu0 0
      %2960 = vmatmul.mubr.bf16.gmra.mxu0 %v2897
      %v2961 = vpop.f32.mrf.mxu0
      %v2962 = vadd.f32 0.0, %v2961
      %v2963 = vpop.f32.mrf.mxu0
      %v2964 = vpop.f32.mrf.mxu0
      %v2965 = vadd.f32 0.0, %v2964
      %v2966 = vpop.f32.mrf.mxu0
      %2967 = vdwg.mxu0
      %v2968 = vld [vmem:[%s2] sm:$0x1]
      %v2970 = vlaneseq
      %v2971 = vshrl.u32 %v2970, 7
      %v2972 = vsub.s32 0, %v2971
      %v2973 = vrot.slane %v2968, %v2972
      %v2975 = vmul.f32 %v2938, %v2973
      %v2976 = vmul.f32 %v2941, %v2973
      %v2977 = vmul.f32 %v2946, %v2973
      %v2978 = vmul.f32 %v2949, %v2973
      %v2979 = vmul.f32 %v2954, %v2973
      %v2980 = vmul.f32 %v2957, %v2973
      %v2981 = vmul.f32 %v2962, %v2973
      %v2982 = vmul.f32 %v2965, %v2973
      %v2983 = vld [vmem:[%s3] sm:$0x1]
      %v2985 = vlaneseq
      %v2986 = vshrl.u32 %v2985, 7
      %v2987 = vsub.s32 0, %v2986
      %v2988 = vrot.slane %v2983, %v2987
      %v2990 = vadd.f32 %v2975, %v2988
      %v2991 = vadd.f32 %v2976, %v2988
      %v2992 = vadd.f32 %v2977, %v2988
      %v2993 = vadd.f32 %v2978, %v2988
      %v2994 = vadd.f32 %v2979, %v2988
      %v2995 = vadd.f32 %v2980, %v2988
      %v2996 = vadd.f32 %v2981, %v2988
      %v2997 = vadd.f32 %v2982, %v2988
      %v2998 = vmax.f32 %v2990, 0.0
      %v2999 = vmax.f32 %v2991, 0.0
      %v3000 = vmax.f32 %v2992, 0.0
      %v3001 = vmax.f32 %v2993, 0.0
      %v3002 = vmax.f32 %v2994, 0.0
      %v3003 = vmax.f32 %v2995, 0.0
      %v3004 = vmax.f32 %v2996, 0.0
      %v3005 = vmax.f32 %v2997, 0.0
      %v3006 = vpack.c.bf16 %v2998, %v2998
      %v3007 = vpack.c.bf16 %v2999, %v2999
      %v3008 = vpack.c.bf16 %v3000, %v3000
      %v3009 = vpack.c.bf16 %v3001, %v3001
      %v3010 = vpack.c.bf16 %v3002, %v3002
      %v3011 = vpack.c.bf16 %v3003, %v3003
      %v3012 = vpack.c.bf16 %v3004, %v3004
      %v3013 = vpack.c.bf16 %v3005, %v3005
      %v3015 = vshrl.u32 %v3006, 16
      %v3017 = vrot.slane %v3015, 7
      %v3018 = vshll.u32 %v3006, 16
      %v3020 = vor.u32 %v3017, %v3018
      %v3022 = vshrl.u32 %v3007, 16
      %v3024 = vrot.slane %v3022, 7
      %v3025 = vshll.u32 %v3007, 16
      %v3027 = vor.u32 %v3024, %v3025
      %v3029 = vshrl.u32 %v3008, 16
      %v3031 = vrot.slane %v3029, 7
      %v3032 = vshll.u32 %v3008, 16
      %v3034 = vor.u32 %v3031, %v3032
      %v3036 = vshrl.u32 %v3009, 16
      %v3038 = vrot.slane %v3036, 7
      %v3039 = vshll.u32 %v3009, 16
      %v3041 = vor.u32 %v3038, %v3039
      %v3043 = vshrl.u32 %v3010, 16
      %v3045 = vrot.slane %v3043, 7
      %v3046 = vshll.u32 %v3010, 16
      %v3048 = vor.u32 %v3045, %v3046
      %v3050 = vshrl.u32 %v3011, 16
      %v3052 = vrot.slane %v3050, 7
      %v3053 = vshll.u32 %v3011, 16
      %v3055 = vor.u32 %v3052, %v3053
      %v3057 = vshrl.u32 %v3012, 16
      %v3059 = vrot.slane %v3057, 7
      %v3060 = vshll.u32 %v3012, 16
      %v3062 = vor.u32 %v3059, %v3060
      %v3064 = vshrl.u32 %v3013, 16
      %v3066 = vrot.slane %v3064, 7
      %v3067 = vshll.u32 %v3013, 16
      %v3069 = vor.u32 %v3066, %v3067
      %v3078 = vsel %vm2480, 0, %v3020
      %v3079 = vsel %vm2480, 0, %v3027
      %v3080 = vsel %vm2480, 0, %v3034
      %v3081 = vsel %vm2480, 0, %v3041
      %v3082 = vsel %vm2480, 0, %v3048
      %v3083 = vsel %vm2480, 0, %v3055
      %v3084 = vsel %vm2480, 0, %v3062
      %v3085 = vsel %vm2480, 0, %v3069
      %v3086 = vsel %vm2492, %v3078, 0
      %v3087 = vsel %vm2492, %v3079, 0
      %v3088 = vsel %vm2492, %v3080, 0
      %v3089 = vsel %vm2492, %v3081, 0
      %v3090 = vsel %vm2492, %v3082, 0
      %v3091 = vsel %vm2492, %v3083, 0
      %v3092 = vsel %vm2492, %v3084, 0
      %v3093 = vsel %vm2492, %v3085, 0
      %v3095 = vshrl.u32 %v3086, 16
      %v3097 = vshll.u32 %v3086, 16
      %v3099 = vrot.slane %v3097, 1
      %v3100 = vor.u32 %v3095, %v3099
      %v3102 = vshrl.u32 %v3087, 16
      %v3104 = vshll.u32 %v3087, 16
      %v3106 = vrot.slane %v3104, 1
      %v3107 = vor.u32 %v3102, %v3106
      %v3109 = vshrl.u32 %v3088, 16
      %v3111 = vshll.u32 %v3088, 16
      %v3113 = vrot.slane %v3111, 1
      %v3114 = vor.u32 %v3109, %v3113
      %v3116 = vshrl.u32 %v3089, 16
      %v3118 = vshll.u32 %v3089, 16
      %v3120 = vrot.slane %v3118, 1
      %v3121 = vor.u32 %v3116, %v3120
      %v3123 = vshrl.u32 %v3090, 16
      %v3125 = vshll.u32 %v3090, 16
      %v3127 = vrot.slane %v3125, 1
      %v3128 = vor.u32 %v3123, %v3127
      %v3130 = vshrl.u32 %v3091, 16
      %v3132 = vshll.u32 %v3091, 16
      %v3134 = vrot.slane %v3132, 1
      %v3135 = vor.u32 %v3130, %v3134
      %v3137 = vshrl.u32 %v3092, 16
      %v3139 = vshll.u32 %v3092, 16
      %v3141 = vrot.slane %v3139, 1
      %v3142 = vor.u32 %v3137, %v3141
      %3143 = vrot.lane.b32.xlu0 %v2508, 8
      %v3144 = vpop.permute.xlu0 %3143
      %3145 = vrot.lane.b32.xlu0 %v3100, 8
      %v3146 = vpop.permute.xlu0 %3145
      %3147 = vrot.lane.b32.xlu0 %v3107, 8
      %v3148 = vpop.permute.xlu0 %3147
      %3149 = vrot.lane.b32.xlu0 %v3114, 8
      %v3150 = vpop.permute.xlu0 %3149
      %3151 = vrot.lane.b32.xlu0 %v3121, 8
      %v3152 = vpop.permute.xlu0 %3151
      %3153 = vrot.lane.b32.xlu0 %v3128, 8
      %v3154 = vpop.permute.xlu0 %3153
      %3155 = vrot.lane.b32.xlu0 %v3135, 8
      %v3156 = vpop.permute.xlu0 %3155
      %3157 = vrot.lane.b32.xlu0 %v3142, 8
      %v3158 = vpop.permute.xlu0 %3157
      %v3166 = vrot.slane %v3086, 1
      %v3167 = vrot.slane %v3087, 1
      %v3168 = vrot.slane %v3088, 1
      %v3169 = vrot.slane %v3089, 1
      %v3170 = vrot.slane %v3090, 1
      %v3171 = vrot.slane %v3091, 1
      %v3172 = vrot.slane %v3092, 1
      %3173 = vrot.lane.b32.xlu0 %v2582, 16
      %v3174 = vpop.permute.xlu0 %3173
      %3175 = vrot.lane.b32.xlu0 %v3166, 16
      %v3176 = vpop.permute.xlu0 %3175
      %3177 = vrot.lane.b32.xlu0 %v3167, 16
      %v3178 = vpop.permute.xlu0 %3177
      %3179 = vrot.lane.b32.xlu0 %v3168, 16
      %v3180 = vpop.permute.xlu0 %3179
      %3181 = vrot.lane.b32.xlu0 %v3169, 16
      %v3182 = vpop.permute.xlu0 %3181
      %3183 = vrot.lane.b32.xlu0 %v3170, 16
      %v3184 = vpop.permute.xlu0 %3183
      %3185 = vrot.lane.b32.xlu0 %v3171, 16
      %v3186 = vpop.permute.xlu0 %3185
      %3187 = vrot.lane.b32.xlu0 %v3172, 16
      %v3188 = vpop.permute.xlu0 %3187
      %3190 = vrot.lane.b32.xlu0 %v3086, 24
      %v3191 = vpop.permute.xlu0 %3190
      %3192 = vrot.lane.b32.xlu0 %v3087, 24
      %v3193 = vpop.permute.xlu0 %3192
      %3194 = vrot.lane.b32.xlu0 %v3088, 24
      %v3195 = vpop.permute.xlu0 %3194
      %3196 = vrot.lane.b32.xlu0 %v3089, 24
      %v3197 = vpop.permute.xlu0 %3196
      %3198 = vrot.lane.b32.xlu0 %v3090, 24
      %v3199 = vpop.permute.xlu0 %3198
      %3200 = vrot.lane.b32.xlu0 %v3091, 24
      %v3201 = vpop.permute.xlu0 %3200
      %3202 = vrot.lane.b32.xlu0 %v3092, 24
      %v3203 = vpop.permute.xlu0 %3202
      %3204 = vrot.lane.b32.xlu0 %v3093, 24
      %v3205 = vpop.permute.xlu0 %3204
      %v3207 = vshrl.u32 %v3093, 16
      %v3209 = vshll.u32 %v3093, 16
      %v3211 = vrot.slane %v3209, 1
      %v3212 = vor.u32 %v3207, %v3211
      %3213 = vrot.lane.b32.xlu0 %v3100, 32
      %v3214 = vpop.permute.xlu0 %3213
      %3215 = vrot.lane.b32.xlu0 %v3107, 32
      %v3216 = vpop.permute.xlu0 %3215
      %3217 = vrot.lane.b32.xlu0 %v3114, 32
      %v3218 = vpop.permute.xlu0 %3217
      %3219 = vrot.lane.b32.xlu0 %v3121, 32
      %v3220 = vpop.permute.xlu0 %3219
      %3221 = vrot.lane.b32.xlu0 %v3128, 32
      %v3222 = vpop.permute.xlu0 %3221
      %3223 = vrot.lane.b32.xlu0 %v3135, 32
      %v3224 = vpop.permute.xlu0 %3223
      %3225 = vrot.lane.b32.xlu0 %v3142, 32
      %v3226 = vpop.permute.xlu0 %3225
      %3227 = vrot.lane.b32.xlu0 %v3212, 32
      %v3228 = vpop.permute.xlu0 %3227
      %v3229 = vrot.slane %v3093, 1
      %3230 = vrot.lane.b32.xlu0 %v3166, 40
      %v3231 = vpop.permute.xlu0 %3230
      %3232 = vrot.lane.b32.xlu0 %v3167, 40
      %v3233 = vpop.permute.xlu0 %3232
      %3234 = vrot.lane.b32.xlu0 %v3168, 40
      %v3235 = vpop.permute.xlu0 %3234
      %3236 = vrot.lane.b32.xlu0 %v3169, 40
      %v3237 = vpop.permute.xlu0 %3236
      %3238 = vrot.lane.b32.xlu0 %v3170, 40
      %v3239 = vpop.permute.xlu0 %3238
      %3240 = vrot.lane.b32.xlu0 %v3171, 40
      %v3241 = vpop.permute.xlu0 %3240
      %3242 = vrot.lane.b32.xlu0 %v3172, 40
      %v3243 = vpop.permute.xlu0 %3242
      %3244 = vrot.lane.b32.xlu0 %v3229, 40
      %v3245 = vpop.permute.xlu0 %3244
      %3246 = vrot.lane.b32.xlu0 %v3087, 48
      %v3247 = vpop.permute.xlu0 %3246
      %3248 = vrot.lane.b32.xlu0 %v3088, 48
      %v3249 = vpop.permute.xlu0 %3248
      %3250 = vrot.lane.b32.xlu0 %v3089, 48
      %v3251 = vpop.permute.xlu0 %3250
      %3252 = vrot.lane.b32.xlu0 %v3090, 48
      %v3253 = vpop.permute.xlu0 %3252
      %3254 = vrot.lane.b32.xlu0 %v3091, 48
      %v3255 = vpop.permute.xlu0 %3254
      %3256 = vrot.lane.b32.xlu0 %v3092, 48
      %v3257 = vpop.permute.xlu0 %3256
      %3258 = vrot.lane.b32.xlu0 %v3093, 48
      %v3259 = vpop.permute.xlu0 %3258
      %3260 = vrot.lane.b32.xlu0 %v2493, 48
      %v3261 = vpop.permute.xlu0 %3260
      %3262 = vrot.lane.b32.xlu0 %v3107, 56
      %v3263 = vpop.permute.xlu0 %3262
      %3264 = vrot.lane.b32.xlu0 %v3114, 56
      %v3265 = vpop.permute.xlu0 %3264
      %3266 = vrot.lane.b32.xlu0 %v3121, 56
      %v3267 = vpop.permute.xlu0 %3266
      %3268 = vrot.lane.b32.xlu0 %v3128, 56
      %v3269 = vpop.permute.xlu0 %3268
      %3270 = vrot.lane.b32.xlu0 %v3135, 56
      %v3271 = vpop.permute.xlu0 %3270
      %3272 = vrot.lane.b32.xlu0 %v3142, 56
      %v3273 = vpop.permute.xlu0 %3272
      %3274 = vrot.lane.b32.xlu0 %v3212, 56
      %v3275 = vpop.permute.xlu0 %3274
      %3276 = vrot.lane.b32.xlu0 %v2508, 56
      %v3277 = vpop.permute.xlu0 %3276
      %3278 = vrot.lane.b32.xlu0 %v3167, 64
      %v3279 = vpop.permute.xlu0 %3278
      %3280 = vrot.lane.b32.xlu0 %v3168, 64
      %v3281 = vpop.permute.xlu0 %3280
      %3282 = vrot.lane.b32.xlu0 %v3169, 64
      %v3283 = vpop.permute.xlu0 %3282
      %3284 = vrot.lane.b32.xlu0 %v3170, 64
      %v3285 = vpop.permute.xlu0 %3284
      %3286 = vrot.lane.b32.xlu0 %v3171, 64
      %v3287 = vpop.permute.xlu0 %3286
      %3288 = vrot.lane.b32.xlu0 %v3172, 64
      %v3289 = vpop.permute.xlu0 %3288
      %3290 = vrot.lane.b32.xlu0 %v3229, 64
      %v3291 = vpop.permute.xlu0 %3290
      %3292 = vrot.lane.b32.xlu0 %v2582, 64
      %v3293 = vpop.permute.xlu0 %3292
      %v3295 = vsel %vm2727, %v2493, %v3144
      %v3297 = vsel %vm2727, %v3086, %v3146
      %v3299 = vsel %vm2727, %v3087, %v3148
      %v3301 = vsel %vm2727, %v3088, %v3150
      %v3303 = vsel %vm2727, %v3089, %v3152
      %v3305 = vsel %vm2727, %v3090, %v3154
      %v3307 = vsel %vm2727, %v3091, %v3156
      %v3309 = vsel %vm2727, %v3092, %v3158
      %v3311 = vsel %vm2761, %v3295, %v3174
      %v3313 = vsel %vm2761, %v3297, %v3176
      %v3315 = vsel %vm2761, %v3299, %v3178
      %v3317 = vsel %vm2761, %v3301, %v3180
      %v3319 = vsel %vm2761, %v3303, %v3182
      %v3321 = vsel %vm2761, %v3305, %v3184
      %v3323 = vsel %vm2761, %v3307, %v3186
      %v3325 = vsel %vm2761, %v3309, %v3188
      %v3327 = vsel %vm2795, %v3311, %v3191
      %v3329 = vsel %vm2795, %v3313, %v3193
      %v3331 = vsel %vm2795, %v3315, %v3195
      %v3333 = vsel %vm2795, %v3317, %v3197
      %v3335 = vsel %vm2795, %v3319, %v3199
      %v3337 = vsel %vm2795, %v3321, %v3201
      %v3339 = vsel %vm2795, %v3323, %v3203
      %v3341 = vsel %vm2795, %v3325, %v3205
      %v3343 = vsel %vm2829, %v3327, %v3214
      %v3345 = vsel %vm2829, %v3329, %v3216
      %v3347 = vsel %vm2829, %v3331, %v3218
      %v3349 = vsel %vm2829, %v3333, %v3220
      %v3351 = vsel %vm2829, %v3335, %v3222
      %v3353 = vsel %vm2829, %v3337, %v3224
      %v3355 = vsel %vm2829, %v3339, %v3226
      %v3357 = vsel %vm2829, %v3341, %v3228
      %vm3358 = vcmask 326656
      %v3360 = vsel %vm3358, %v3343, %v3231
      %v3362 = vsel %vm3358, %v3345, %v3233
      %v3364 = vsel %vm3358, %v3347, %v3235
      %v3366 = vsel %vm3358, %v3349, %v3237
      %v3368 = vsel %vm3358, %v3351, %v3239
      %v3370 = vsel %vm3358, %v3353, %v3241
      %v3372 = vsel %vm3358, %v3355, %v3243
      %v3374 = vsel %vm3358, %v3357, %v3245
      %vm3375 = vcmask 392192
      %v3377 = vsel %vm3375, %v3360, %v3247
      %v3379 = vsel %vm3375, %v3362, %v3249
      %v3381 = vsel %vm3375, %v3364, %v3251
      %v3383 = vsel %vm3375, %v3366, %v3253
      %v3385 = vsel %vm3375, %v3368, %v3255
      %v3387 = vsel %vm3375, %v3370, %v3257
      %v3389 = vsel %vm3375, %v3372, %v3259
      %v3391 = vsel %vm3375, %v3374, %v3261
      %vm3392 = vcmask 457728
      %v3394 = vsel %vm3392, %v3377, %v3263
      %v3396 = vsel %vm3392, %v3379, %v3265
      %v3398 = vsel %vm3392, %v3381, %v3267
      %v3400 = vsel %vm3392, %v3383, %v3269
      %v3402 = vsel %vm3392, %v3385, %v3271
      %v3404 = vsel %vm3392, %v3387, %v3273
      %v3406 = vsel %vm3392, %v3389, %v3275
      %v3408 = vsel %vm3392, %v3391, %v3277
      %vm3409 = vcmask 523264
      %v3411 = vsel %vm3409, %v3394, %v3279
      %v3413 = vsel %vm3409, %v3396, %v3281
      %v3415 = vsel %vm3409, %v3398, %v3283
      %v3417 = vsel %vm3409, %v3400, %v3285
      %v3419 = vsel %vm3409, %v3402, %v3287
      %v3421 = vsel %vm3409, %v3404, %v3289
      %v3423 = vsel %vm3409, %v3406, %v3291
      %v3425 = vsel %vm3409, %v3408, %v3293
      %v3426 = vld [vmem:[%s4] sm:$0xf]
      %v3435 = vunpack.c.l.b16 %v3411
      %v3436 = vunpack.c.l.b16 %v3413
      %v3437 = vunpack.c.l.b16 %v3415
      %v3438 = vunpack.c.l.b16 %v3417
      %v3439 = vunpack.c.l.b16 %v3419
      %v3440 = vunpack.c.l.b16 %v3421
      %v3441 = vunpack.c.l.b16 %v3423
      %v3442 = vunpack.c.l.b16 %v3425
      %v3443 = vpack.c.b16 %v3436, %v3435
      %v3444 = vpack.c.b16 %v3438, %v3437
      %v3445 = vpack.c.b16 %v3440, %v3439
      %v3446 = vpack.c.b16 %v3442, %v3441
      %vm3447 = vcmask 588800
      %v3449 = vsel %vm3447, %v3426, 0
      %v3452 = vsel %vm3447, %v3443, 0
      %v3455 = vsel %vm3447, %v3444, 0
      %v3458 = vsel %vm3447, %v3445, 0
      %v3461 = vsel %vm3447, %v3446, 0
      %3463 = vmatprep.subr.bf16.mxu0 0
      %3464 = vmatpush1.bf16.xpose.msra.mxu0 0
      %3465 = vmatprep.subr.bf16.mxu0 0
      %3466 = vmatpush1.bf16.xpose.msra.mxu0 0
      %3467 = vmatprep.subr.bf16.mxu0 0
      %3468 = vmatpush1.bf16.xpose.msra.mxu0 0
      %3469 = vmatprep.subr.bf16.mxu0 0
      %3470 = vmatpush1.bf16.xpose.msra.mxu0 0
      %3471 = vmatprep.subr.bf16.mxu0 0
      %3472 = vmatpush1.bf16.xpose.msra.mxu0 %v3461
      %3473 = vmatprep.subr.bf16.mxu0 0
      %3474 = vmatpush1.bf16.xpose.msra.mxu0 %v3458
      %3475 = vmatprep.subr.bf16.mxu0 0
      %3476 = vmatpush1.bf16.xpose.msra.mxu0 %v3455
      %3477 = vmatprep.subr.bf16.mxu0 0
      %3478 = vmatpush1.bf16.xpose.msra.mxu0 %v3452
      %3479 = vmatprep.subr.bf16.mxu0 0
      %3480 = vmatpush2.bf16.xpose.msra.mxu0 0
      %3481 = vmatprep.subr.bf16.mxu0 0
      %3482 = vmatpush2.bf16.xpose.msra.mxu0 0
      %3483 = vmatprep.subr.bf16.mxu0 0
      %3484 = vmatpush2.bf16.xpose.msra.mxu0 0
      %3485 = vmatprep.subr.bf16.mxu0 0
      %3486 = vmatpush2.bf16.xpose.msra.mxu0 0
      %3487 = vmatprep.subr.bf16.mxu0 0
      %3488 = vmatpush2.bf16.xpose.msra.mxu0 0
      %3489 = vmatprep.subr.bf16.mxu0 0
      %3490 = vmatpush2.bf16.xpose.msra.mxu0 0
      %3491 = vmatprep.subr.bf16.mxu0 0
      %3492 = vmatpush2.bf16.xpose.msra.mxu0 0
      %3493 = vmatprep.subr.bf16.mxu0 0
      %3494 = vmatpush2.bf16.xpose.msra.mxu0 0
      %3495 = vmatprep.mubr.bf16.mxu0 0
      %3496 = vmatmul.mubr.bf16.gmra.mxu0 %v3449
      %v3497 = vpop.f32.mrf.mxu0
      %v3498 = vadd.f32 0.0, %v3497
      %v3499 = vpop.f32.mrf.mxu0
      %v3500 = vpop.f32.mrf.mxu0
      %v3501 = vpop.f32.mrf.mxu0
      %3502 = vdwg.mxu0
      %v3503 = vld [vmem:[%s5] sm:$0xff]
      %3505 = vset.pattern.permute.xlu0 0
      %3506 = vperm.xlu0 %3505, %v3503
      %v3507 = vpop.permute.xlu0 %3506
      %v3509 = vmul.f32 %v3498, %v3507
      %v3510 = vld [vmem:[%s6] sm:$0xff]
      %3512 = vset.pattern.permute.xlu0 0
      %3513 = vperm.xlu0 %3512, %v3510
      %v3514 = vpop.permute.xlu0 %3513
      %v3516 = vadd.f32 %v3509, %v3514
      %v3517 = vmax.f32 %v3516, 0.0
      %3518 = vst.msk [vmem:[%s276] sm:$0xff] %vm3409, %v3517
      %p3519 = scmp.lt.s32.totalorder %s18, 1
      %s3520 = scalar_select %p3519, %s18, 1
      %s3521 = smul.addr %s3520, 8
      %s3522 = scalar_lea.vmem %s7, %s3521
      // Predicated region
      $region49: #{down_forward.1} parent=47 // pred_check
        %p3523 = pneg %p188
      $region50: #{down_forward.1} parent=47 // pred_check_branch
        %3525 = sbr.rel (%p3523) target = $region52
      $region51: #{down_forward.1} parent=47 // pred_region
        _
      $region52: #{down_forward.1} parent=47 // pred_fallthru
        _
    $region48: #{down_forward.1} parent=5 // pred_fallthru
      _
    %p3526 = scmp.le.s32.totalorder 2, %s13
    // Predicated region
    $region53: #{down_forward.1} parent=5 // pred_check
      %p3527 = pneg %p3526
    $region54: #{down_forward.1} parent=5 // pred_check_branch
      %3529 = sbr.rel (%p3527) target = $region56
    $region55: #{down_forward.1} parent=5 // pred_region
      %s3530 = ssub.s32 %s13, 2
      // Predicated region
      $region57: #{down_forward.1} parent=55 // pred_check
        %p3531 = pneg %p194
      $region58: #{down_forward.1} parent=55 // pred_check_branch
        %3533 = sbr.rel (%p3531) target = $region60
      $region59: #{down_forward.1} parent=55 // pred_region
        %p3534 = scmp.lt.s32.totalorder %s19, 1
        %s3535 = scalar_select %p3534, %s19, 1
        %s3536 = smul.addr %s3535, 8
        %s3537 = scalar_lea.vmem %s7, %s3536
      $region60: #{down_forward.1} parent=55 // pred_fallthru
        _
    $region56: #{down_forward.1} parent=5 // pred_fallthru
      _
  $region6: #{down_forward.1} parent=0 // loop_footer
    %s17 = sadd.s32 1, %s13
  $region7: #{down_forward.1} parent=0 // loop_footer_branch
    %12 = sbr.rel target = $region3
  $region8: #{down_forward.1} parent=0 // loop_exit
    _

</llo_original>
